<compile_context>
chip_gen: v7x
topology: tpu7x:2x2x1
jax: 0.10.0
libtpu: 0.0.40
codegen_flags: <defaults>
</compile_context>

<pallas_src>
import functools

import jax
import jax.numpy as jnp
import numpy as np
from jax.experimental import pallas as pl
from jax.experimental.pallas import tpu as pltpu


# ----------------------------------------------------------------------------
# Kernels
# ----------------------------------------------------------------------------
def _dequant_chunk(qw_chunk, sc_ref, zp_ref, *, e, row, bits):
    """Dequantize element `e` of an int32 chunk: (w - zp) * scale, f32."""
    mask = (1 << bits) - 1
    w = ((qw_chunk >> (bits * e)) & mask).astype(jnp.float32)
    sc = sc_ref[row:row + 1, :]          # (1, tn) f32
    zp = zp_ref[row:row + 1, :]          # (1, tn) f32
    return (w - zp) * sc                 # exact in f32 for any bits <= 8


def _woq_scratch_kernel(x_ref, qw_ref, sc_ref, zp_ref, b_ref, o_ref, w_ref, *,
                        bits, gs, kc):
    """Prefill path: dequantize the W^T tile once per N tile, reuse over M.

    x_ref  : (bm, K)  bf16   activations, natural K order
    qw_ref : (Kp, tn) int32  e-major repacked weights (prepare_woq_params)
    sc_ref : (G, tn)  f32    per-group scales
    zp_ref : (G, tn)  f32    per-group zero points
    b_ref  : (1, tn)  f32    bias
    o_ref  : (bm, tn)        output tile
    w_ref  : (K, tn)  bf16   scratch: dequantized W^T tile, natural K rows
    """
    n_pack = 32 // bits
    kp, _ = qw_ref.shape
    gp = sc_ref.shape[0] // n_pack        # groups per e-chunk

    @pl.when(pl.program_id(1) == 0)       # m axis must stay "arbitrary"
    def _dequant_tile():
        # Chunked so int32 words / f32 temporaries stay register-resident.
        for p0 in range(0, kp, kc):
            qw_chunk = qw_ref[p0:p0 + kc, :]
            g0 = p0 // gs
            for e in range(n_pack):
                w = _dequant_chunk(qw_chunk, sc_ref, zp_ref,
                                   e=e, row=e * gp + g0, bits=bits)
                w_ref[e * kp + p0:e * kp + p0 + kc, :] = w.astype(jnp.bfloat16)

    # Hot path: single bf16 MXU matmul with f32 accumulation.
    o_ref[...] = (jnp.dot(x_ref[...], w_ref[...],
                          preferred_element_type=jnp.float32)
                  + b_ref[...]).astype(o_ref.dtype)


def _woq_fused_kernel(x_ref, qw_ref, sc_ref, zp_ref, b_ref, o_ref, *,
                      bits, gs, kc):
    """Decode path (single M block): fuse per-chunk dequant into accumulated
    matmuls -- no (K, tn) scratch store+reload."""
    n_pack = 32 // bits
    kp, tn = qw_ref.shape
    gp = sc_ref.shape[0] // n_pack
    bm = x_ref.shape[0]

    acc = jnp.zeros((bm, tn), jnp.float32)
    # TODO(synk): for very large K switch to lax.fori_loop over chunks (dynamic
    # pl.ds indices) to bound unrolled code size.
    for p0 in range(0, kp, kc):
        qw_chunk = qw_ref[p0:p0 + kc, :]
        g0 = p0 // gs
        for e in range(n_pack):
            w = _dequant_chunk(qw_chunk, sc_ref, zp_ref,
                               e=e, row=e * gp + g0, bits=bits)
            k0 = e * kp + p0                       # natural K offset of chunk
            acc = acc + jnp.dot(x_ref[:, k0:k0 + kc], w.astype(jnp.bfloat16),
                                preferred_element_type=jnp.float32)
    o_ref[...] = (acc + b_ref[...]).astype(o_ref.dtype)


# ----------------------------------------------------------------------------
# One-time (init) parameter preparation: e-major repack + zp unpack.
# ----------------------------------------------------------------------------
def _round_up(v, m):
    return -(-v // m) * m


def prepare_woq_params(qweight, qzeros, scales, bias, *, bits, group_size):
    """Convert optimum-format buffers for the kernel.  Done once at init.

    - repacks qweight "e-major": element e of word p holds K index e*Kp + p,
      so the in-kernel per-e unpack lands in natural K order (no x permute);
    - unpacks qzeros to f32 zero points (optimum +1 / wrap-to-0 rule);
    - casts scales / bias to f32.
    """
    n_pack = 32 // bits
    mask = (1 << bits) - 1

    qw = np.asarray(qweight).astype(np.int64) & 0xFFFFFFFF
    Kp, N = qw.shape
    K = Kp * n_pack
    G = np.asarray(scales).shape[0]
    assert G * group_size == K, "group_size inconsistent with shapes"
    # e-major repack needs n_pack | G (i.e. K % (group_size * n_pack) == 0).
    # TODO(synk): fall back to a runtime x K-permutation when it does not hold
    # (e.g. groupsize=-1 / per-channel).
    assert G % n_pack == 0, "e-major repack requires n_pack | num_groups"

    shifts = np.arange(n_pack, dtype=np.int64) * bits
    # Unpack to natural K order: w_nat[p*n_pack + e] = element e of word p.
    w_nat = ((qw[:, None, :] >> shifts[None, :, None]) & mask).reshape(K, N)
    # Repack e-major: new word p, element e  <-  w_nat[e*Kp + p].
    w_e = w_nat.reshape(n_pack, Kp, N).transpose(1, 0, 2)          # (Kp, n_pack, N)
    qweight_emajor = np.bitwise_or.reduce(w_e << shifts[None, :, None], axis=1)
    qweight_emajor = qweight_emajor.astype(np.uint32).astype(np.int32)

    qz = np.asarray(qzeros).astype(np.int64) & 0xFFFFFFFF
    zq = ((qz[:, :, None] >> shifts[None, None, :]) & mask).reshape(G, -1)[:, :N]
    zp = zq + 1
    zp = np.where(zp > mask, 0, zp).astype(np.float32)              # optimum wrap

    return dict(
        qweight=jnp.asarray(qweight_emajor),                        # (Kp, N) i32
        zp=jnp.asarray(zp),                                         # (G, N)  f32
        scales=jnp.asarray(np.asarray(scales, dtype=np.float32)),   # (G, N)  f32
        bias=jnp.asarray(np.asarray(bias, dtype=np.float32).reshape(1, N)),
    )


# ----------------------------------------------------------------------------
# Wrapper: tile selection + pallas_call
# ----------------------------------------------------------------------------
def weight_only_linear(x, params, *, bits, group_size, block_m=None,
                       block_n=None, out_dtype=jnp.float32):
    """x: (M, K); params from prepare_woq_params  ->  (M, N) out_dtype."""
    qweight, zp, scales, bias = (params["qweight"], params["zp"],
                                 params["scales"], params["bias"])
    n_pack = 32 // bits
    gs = group_size
    M, K = x.shape
    Kp, N = qweight.shape
    G = scales.shape[0]
    assert Kp * n_pack == K and G * gs == K
    assert N % 128 == 0  # TODO(synk): pad N for out_features not multiple of 128

    # --- VMEM capacity (v5e/v6e: 128 MiB, v7x: 64 MiB per TC) ----------------
    try:
        cap = int(getattr(pltpu.get_tpu_info(), "vmem_capacity_bytes", 64 << 20))
    except Exception:  # pragma: no cover - defensive fallback
        cap = 64 << 20
    budget = int(0.70 * cap)

    # --- tile / padding selection --------------------------------------------
    # decode-shaped (small M): single M block, fused dequant+matmul kernel,
    #   block_n=256 is already past the x-restreaming roofline on all gens.
    # prefill-shaped: dequant-once scratch kernel; prefer block_n up to 512
    #   (v6e/v7x x-restreaming), shrink block_m/block_n to fit the VMEM budget
    #   (matters on v7x's 64 MiB).
    decode = M <= 256
    if decode:
        m_pad = max(_round_up(M, 8), 8)
        bm = m_pad if block_m is None else block_m
        bn_pref = (256, 128)
    else:
        bm = 256 if block_m is None else block_m
        bn_pref = (512, 256, 128)
    bn_opts = ([block_n] if block_n is not None else
               [b for b in bn_pref if b <= N and N % b == 0] or [N])

    def est(bm_, bn_):
        b = (2 * bm_ * K * 2          # x blocks (bf16, double-buffered)
             + 2 * Kp * bn_ * 4       # packed weights (i32)
             + 4 * G * bn_ * 4        # scales + zero points (f32)
             + 2 * bn_ * 4            # bias
             + 2 * bm_ * bn_ * 4)     # output blocks
        if not decode:
            b += K * bn_ * 2          # dequantized W^T scratch (bf16)
        return b

    bn = bn_opts[-1]
    for cand in bn_opts:              # largest block_n that fits the budget
        if est(bm, cand) <= budget:
            bn = cand
            break
    if (not decode) and block_m is None and est(bm, bn) > budget:
        bm = 128                      # v7x / large-K relief valve

    if not decode:
        m_pad = _round_up(M, bm)
    n_m = m_pad // bm
    n_j = N // bn

    # actual working-set estimate (+ headroom), not 2x; keep >=32 MiB so the
    # 16/32 MiB default scoped limits never cap the pipeline.
    vmem_limit = int(min(max(est(bm, bn) + (4 << 20), 32 << 20),
                         int(0.9 * cap)))

    # dequant chunk sizes (rows of packed words); chunk stays inside one group.
    kc_d = min(64 if gs % 64 == 0 else gs, Kp)                 # scratch path
    if gs % 128 == 0:
        kc_f = min(128, Kp)                                     # fused path:
    elif gs % 64 == 0:                                          # lane-friendly
        kc_f = min(64, Kp)                                      # x slices
    else:
        kc_f = min(gs, Kp)

    # --- per-call glue: bf16 cast (+ pad ragged M) ----------------------------
    x_bf = x.astype(jnp.bfloat16)
    if m_pad != M:
        x_bf = jnp.pad(x_bf, ((0, m_pad - M), (0, 0)))

    if n_m == 1:
        kernel = functools.partial(_woq_fused_kernel, bits=bits, gs=gs, kc=kc_f)
        grid = (n_j,)
        in_specs = [
            pl.BlockSpec((bm, K), lambda j: (0, 0)),            # x (resident)
            pl.BlockSpec((Kp, bn), lambda j: (0, j)),           # qweight
            pl.BlockSpec((G, bn), lambda j: (0, j)),            # scales
            pl.BlockSpec((G, bn), lambda j: (0, j)),            # zero points
            pl.BlockSpec((1, bn), lambda j: (0, j)),            # bias
        ]
        out_specs = pl.BlockSpec((bm, bn), lambda j: (0, j))
        scratch = []
        dims = ("parallel",)
    else:
        kernel = functools.partial(_woq_scratch_kernel, bits=bits, gs=gs, kc=kc_d)
        grid = (n_j, n_m)     # j outer (parallel), m inner (arbitrary: scratch
        in_specs = [          # dequantized at m==0 and reused across m)
            pl.BlockSpec((bm, K), lambda j, m: (m, 0)),
            pl.BlockSpec((Kp, bn), lambda j, m: (0, j)),
            pl.BlockSpec((G, bn), lambda j, m: (0, j)),
            pl.BlockSpec((G, bn), lambda j, m: (0, j)),
            pl.BlockSpec((1, bn), lambda j, m: (0, j)),
        ]
        out_specs = pl.BlockSpec((bm, bn), lambda j, m: (m, j))
        scratch = [pltpu.VMEM((K, bn), jnp.bfloat16)]
        dims = ("parallel", "arbitrary")   # do NOT make m parallel (dequant guard)

    y = pl.pallas_call(
        kernel,
        out_shape=jax.ShapeDtypeStruct((m_pad, N), out_dtype),
        grid_spec=pltpu.PrefetchScalarGridSpec(
            num_scalar_prefetch=0,
            grid=grid,
            in_specs=in_specs,
            out_specs=out_specs,
            scratch_shapes=scratch,
        ),
        compiler_params=pltpu.CompilerParams(
            dimension_semantics=dims,
            vmem_limit_bytes=vmem_limit),
    )(x_bf, qweight, scales, zp, bias)

    return y[:M] if m_pad != M else y


# ----------------------------------------------------------------------------
# Test helpers (mirror WeightOnlyLinear.pack / recover, host-side)
# ----------------------------------------------------------------------------
def pack_int32(vals, bits, axis):
    """Pack groups of n_pack (=32//bits) low-`bits` values along `axis` into
    int32 words (value e shifted by bits*e), matching the module's pack()."""
    n_pack = 32 // bits
    mask = (1 << bits) - 1
    v = np.asarray(vals).astype(np.int64) & mask
    v = np.moveaxis(v, axis, -1)
    shp = v.shape
    v = v.reshape(shp[:-1] + (shp[-1] // n_pack, n_pack))
    shifts = np.arange(n_pack, dtype=np.int64) * bits
    words = np.bitwise_or.reduce(v << shifts, axis=-1)
    return jnp.asarray(np.moveaxis(words.astype(np.uint32).astype(np.int32),
                                   -1, axis))


def recover_weight(qweight, qzeros, scales, *, bits, group_size):
    """Exact f32 replica of recover() in W^T (in_features, out_features) layout."""
    n_pack = 32 // bits
    mask = (1 << bits) - 1
    qw = np.asarray(qweight).astype(np.int64) & 0xFFFFFFFF
    Kp, N = qw.shape
    K = Kp * n_pack
    e = np.arange(n_pack)
    w = ((qw[:, None, :] >> (bits * e)[None, :, None]) & mask).reshape(K, N)
    qz = np.asarray(qzeros).astype(np.int64) & 0xFFFFFFFF
    G = qz.shape[0]
    zq = ((qz[:, :, None] >> (bits * e)[None, None, :]) & mask).reshape(G, -1)[:, :N]
    zp = zq + 1
    zp = np.where(zp > mask, 0, zp)
    g_idx = np.arange(K) // group_size
    return (w - zp[g_idx, :]).astype(np.float32) * np.asarray(
        scales, np.float32)[g_idx, :]


# ----------------------------------------------------------------------------
if __name__ == "__main__":
    # small, module-consistent shapes: 4-bit group-wise quantized linear
    in_features, out_features = 1024, 256
    bits, group_size = 4, 128
    n_pack = 32 // bits
    n_groups = in_features // group_size
    mask = (1 << bits) - 1

    key = jax.random.PRNGKey(0)
    k1, k2, k3, k4, k5 = jax.random.split(key, 5)

    # unsigned quantized weights in W^T layout (in_features, out_features)
    w_uint = jax.random.randint(k2, (in_features, out_features), 0, 2 ** bits,
                                dtype=jnp.int32)
    zp_true = jax.random.randint(k3, (n_groups, out_features), 0, 2 ** bits,
                                 dtype=jnp.int32)
    scales = (jax.random.uniform(k4, (n_groups, out_features),
                                 dtype=jnp.float32) * 0.09 + 0.01
              ).astype(jnp.float16)
    bias = (jax.random.normal(k5, (out_features,), dtype=jnp.float32) * 0.1
            ).astype(jnp.float16)

    # optimum-format buffers (module pack() equivalent, done once at init)
    qweight = pack_int32(w_uint, bits, axis=0)                 # (K//n_pack, N)
    qzeros = pack_int32((np.asarray(zp_true) - 1) & mask,      # stores zp - 1
                        bits, axis=1)                          # (G, N//n_pack)

    # one-time kernel-side preparation (e-major repack + zp unpack)
    params = prepare_woq_params(qweight, qzeros, scales, bias,
                                bits=bits, group_size=group_size)

    W = recover_weight(qweight, qzeros, scales, bits=bits, group_size=group_size)
    bias_f32 = np.asarray(bias, np.float32)

    # exercise both the fused decode path (M=16) and the scratch prefill path
    # (M=512 -> two M blocks of 256)
    for M in (16, 512):
        xk = jax.random.fold_in(k1, M)
        x = jax.random.normal(xk, (M, in_features), dtype=jnp.float32)

        y = weight_only_linear(x, params, bits=bits, group_size=group_size)
        y = np.asarray(jax.block_until_ready(y))
        assert y.shape == (M, out_features)

        # Reference 1: same dequant semantics with the kernel's bf16 MXU feed
        # (products are exact, so this checks unpack/zp/scale/repack tightly).
        x_bf = np.asarray(jnp.asarray(x).astype(jnp.bfloat16).astype(jnp.float32))
        W_bf = np.asarray(jnp.asarray(W).astype(jnp.bfloat16).astype(jnp.float32))
        y_ref = x_bf @ W_bf + bias_f32
        np.testing.assert_allclose(y, y_ref, rtol=2e-2, atol=2e-2)

        # Reference 2: exact fp32 module output (recover() + F.linear); the
        # bf16 MXU feed only adds ~1e-3 relative error, checked norm-wise.
        y_exact = np.asarray(x, np.float32) @ W + bias_f32
        rel = np.linalg.norm(y - y_exact) / np.linalg.norm(y_exact)
        assert rel < 1e-2, f"M={M}: relative error vs exact fp32 reference {rel}"

    print("KERNEL_OK")
</pallas_src>

<mosaic_0001>
module attributes {stable_mosaic.version = 11 : i64} {
  func.func @_woq_fused_kernel(%arg0: i32, %arg1: memref<16x1024xbf16, #tpu.memory_space<vmem>>, %arg2: memref<128x256xi32, #tpu.memory_space<vmem>>, %arg3: memref<8x256xf32, #tpu.memory_space<vmem>>, %arg4: memref<8x256xf32, #tpu.memory_space<vmem>>, %arg5: memref<1x256xf32, #tpu.memory_space<vmem>>, %arg6: memref<16x256xf32, #tpu.memory_space<vmem>>) attributes {dimension_semantics = [#tpu.dimension_semantics<parallel>], iteration_bounds = array<i64: 1>, scalar_prefetch = 0 : i64, scratch_operands = 0 : i64, tpu.core_type = #tpu.core_type<tc>, window_params = [{pipeline_mode = #tpu.pipeline_mode<synchronous>, transform_indices = @transform_0, window_bounds = array<i64: 16, 1024>}, {transform_indices = @transform_1, window_bounds = array<i64: 128, 256>}, {transform_indices = @transform_2, window_bounds = array<i64: 8, 256>}, {transform_indices = @transform_3, window_bounds = array<i64: 8, 256>}, {transform_indices = @transform_4, window_bounds = array<i64: 1, 256>}, {transform_indices = @transform_5, window_bounds = array<i64: 16, 256>}]} {
    %cst = arith.constant 0.000000e+00 : f32
    %0 = vector.broadcast %cst : f32 to vector<16x256xf32>
    %c0 = arith.constant 0 : index
    %c0_0 = arith.constant 0 : index
    %1 = vector.load %arg2[%c0, %c0_0] : memref<128x256xi32, #tpu.memory_space<vmem>>, vector<128x256xi32>
    %c0_i32 = arith.constant 0 : i32
    %2 = vector.broadcast %c0_i32 : i32 to vector<128x256xi32>
    %3 = arith.shrsi %1, %2 : vector<128x256xi32>
    %c15_i32 = arith.constant 15 : i32
    %4 = vector.broadcast %c15_i32 : i32 to vector<128x256xi32>
    %5 = arith.andi %3, %4 : vector<128x256xi32>
    %6 = arith.sitofp %5 : vector<128x256xi32> to vector<128x256xf32>
    %c0_1 = arith.constant 0 : index
    %c0_2 = arith.constant 0 : index
    %7 = vector.load %arg3[%c0_1, %c0_2] : memref<8x256xf32, #tpu.memory_space<vmem>>, vector<1x256xf32>
    %c0_3 = arith.constant 0 : index
    %c0_4 = arith.constant 0 : index
    %8 = vector.load %arg4[%c0_3, %c0_4] : memref<8x256xf32, #tpu.memory_space<vmem>>, vector<1x256xf32>
    %9 = vector.broadcast %8 : vector<1x256xf32> to vector<128x256xf32>
    %10 = arith.subf %6, %9 : vector<128x256xf32>
    %11 = vector.broadcast %7 : vector<1x256xf32> to vector<128x256xf32>
    %12 = arith.mulf %10, %11 : vector<128x256xf32>
    %c0_5 = arith.constant 0 : index
    %c0_6 = arith.constant 0 : index
    %13 = vector.load %arg1[%c0_5, %c0_6] : memref<16x1024xbf16, #tpu.memory_space<vmem>>, vector<16x128xbf16>
    %14 = arith.truncf %12 : vector<128x256xf32> to vector<128x256xbf16>
    %cst_7 = arith.constant dense<0.000000e+00> : vector<16x256xf32>
    %15 = tpu.matmul %13, %14, %cst_7 {dimension_numbers = #tpu.dot_dimension_numbers<[1], [0], [0], [1], [0, 0, 1, 1], [], []>} : vector<16x128xbf16>, vector<128x256xbf16>, vector<16x256xf32> -> vector<16x256xf32>
    %16 = arith.addf %0, %15 : vector<16x256xf32>
    %c4_i32 = arith.constant 4 : i32
    %17 = vector.broadcast %c4_i32 : i32 to vector<128x256xi32>
    %18 = arith.shrsi %1, %17 : vector<128x256xi32>
    %c15_i32_8 = arith.constant 15 : i32
    %19 = vector.broadcast %c15_i32_8 : i32 to vector<128x256xi32>
    %20 = arith.andi %18, %19 : vector<128x256xi32>
    %21 = arith.sitofp %20 : vector<128x256xi32> to vector<128x256xf32>
    %c1 = arith.constant 1 : index
    %c0_9 = arith.constant 0 : index
    %22 = vector.load %arg3[%c1, %c0_9] : memref<8x256xf32, #tpu.memory_space<vmem>>, vector<1x256xf32>
    %c1_10 = arith.constant 1 : index
    %c0_11 = arith.constant 0 : index
    %23 = vector.load %arg4[%c1_10, %c0_11] : memref<8x256xf32, #tpu.memory_space<vmem>>, vector<1x256xf32>
    %24 = vector.broadcast %23 : vector<1x256xf32> to vector<128x256xf32>
    %25 = arith.subf %21, %24 : vector<128x256xf32>
    %26 = vector.broadcast %22 : vector<1x256xf32> to vector<128x256xf32>
    %27 = arith.mulf %25, %26 : vector<128x256xf32>
    %c0_12 = arith.constant 0 : index
    %c128 = arith.constant 128 : index
    %28 = vector.load %arg1[%c0_12, %c128] : memref<16x1024xbf16, #tpu.memory_space<vmem>>, vector<16x128xbf16>
    %29 = arith.truncf %27 : vector<128x256xf32> to vector<128x256xbf16>
    %cst_13 = arith.constant dense<0.000000e+00> : vector<16x256xf32>
    %30 = tpu.matmul %28, %29, %cst_13 {dimension_numbers = #tpu.dot_dimension_numbers<[1], [0], [0], [1], [0, 0, 1, 1], [], []>} : vector<16x128xbf16>, vector<128x256xbf16>, vector<16x256xf32> -> vector<16x256xf32>
    %31 = arith.addf %16, %30 : vector<16x256xf32>
    %c8_i32 = arith.constant 8 : i32
    %32 = vector.broadcast %c8_i32 : i32 to vector<128x256xi32>
    %33 = arith.shrsi %1, %32 : vector<128x256xi32>
    %c15_i32_14 = arith.constant 15 : i32
    %34 = vector.broadcast %c15_i32_14 : i32 to vector<128x256xi32>
    %35 = arith.andi %33, %34 : vector<128x256xi32>
    %36 = arith.sitofp %35 : vector<128x256xi32> to vector<128x256xf32>
    %c2 = arith.constant 2 : index
    %c0_15 = arith.constant 0 : index
    %37 = vector.load %arg3[%c2, %c0_15] : memref<8x256xf32, #tpu.memory_space<vmem>>, vector<1x256xf32>
    %c2_16 = arith.constant 2 : index
    %c0_17 = arith.constant 0 : index
    %38 = vector.load %arg4[%c2_16, %c0_17] : memref<8x256xf32, #tpu.memory_space<vmem>>, vector<1x256xf32>
    %39 = vector.broadcast %38 : vector<1x256xf32> to vector<128x256xf32>
    %40 = arith.subf %36, %39 : vector<128x256xf32>
    %41 = vector.broadcast %37 : vector<1x256xf32> to vector<128x256xf32>
    %42 = arith.mulf %40, %41 : vector<128x256xf32>
    %c0_18 = arith.constant 0 : index
    %c256 = arith.constant 256 : index
    %43 = vector.load %arg1[%c0_18, %c256] : memref<16x1024xbf16, #tpu.memory_space<vmem>>, vector<16x128xbf16>
    %44 = arith.truncf %42 : vector<128x256xf32> to vector<128x256xbf16>
    %cst_19 = arith.constant dense<0.000000e+00> : vector<16x256xf32>
    %45 = tpu.matmul %43, %44, %cst_19 {dimension_numbers = #tpu.dot_dimension_numbers<[1], [0], [0], [1], [0, 0, 1, 1], [], []>} : vector<16x128xbf16>, vector<128x256xbf16>, vector<16x256xf32> -> vector<16x256xf32>
    %46 = arith.addf %31, %45 : vector<16x256xf32>
    %c12_i32 = arith.constant 12 : i32
    %47 = vector.broadcast %c12_i32 : i32 to vector<128x256xi32>
    %48 = arith.shrsi %1, %47 : vector<128x256xi32>
    %c15_i32_20 = arith.constant 15 : i32
    %49 = vector.broadcast %c15_i32_20 : i32 to vector<128x256xi32>
    %50 = arith.andi %48, %49 : vector<128x256xi32>
    %51 = arith.sitofp %50 : vector<128x256xi32> to vector<128x256xf32>
    %c3 = arith.constant 3 : index
    %c0_21 = arith.constant 0 : index
    %52 = vector.load %arg3[%c3, %c0_21] : memref<8x256xf32, #tpu.memory_space<vmem>>, vector<1x256xf32>
    %c3_22 = arith.constant 3 : index
    %c0_23 = arith.constant 0 : index
    %53 = vector.load %arg4[%c3_22, %c0_23] : memref<8x256xf32, #tpu.memory_space<vmem>>, vector<1x256xf32>
    %54 = vector.broadcast %53 : vector<1x256xf32> to vector<128x256xf32>
    %55 = arith.subf %51, %54 : vector<128x256xf32>
    %56 = vector.broadcast %52 : vector<1x256xf32> to vector<128x256xf32>
    %57 = arith.mulf %55, %56 : vector<128x256xf32>
    %c0_24 = arith.constant 0 : index
    %c384 = arith.constant 384 : index
    %58 = vector.load %arg1[%c0_24, %c384] : memref<16x1024xbf16, #tpu.memory_space<vmem>>, vector<16x128xbf16>
    %59 = arith.truncf %57 : vector<128x256xf32> to vector<128x256xbf16>
    %cst_25 = arith.constant dense<0.000000e+00> : vector<16x256xf32>
    %60 = tpu.matmul %58, %59, %cst_25 {dimension_numbers = #tpu.dot_dimension_numbers<[1], [0], [0], [1], [0, 0, 1, 1], [], []>} : vector<16x128xbf16>, vector<128x256xbf16>, vector<16x256xf32> -> vector<16x256xf32>
    %61 = arith.addf %46, %60 : vector<16x256xf32>
    %c16_i32 = arith.constant 16 : i32
    %62 = vector.broadcast %c16_i32 : i32 to vector<128x256xi32>
    %63 = arith.shrsi %1, %62 : vector<128x256xi32>
    %c15_i32_26 = arith.constant 15 : i32
    %64 = vector.broadcast %c15_i32_26 : i32 to vector<128x256xi32>
    %65 = arith.andi %63, %64 : vector<128x256xi32>
    %66 = arith.sitofp %65 : vector<128x256xi32> to vector<128x256xf32>
    %c4 = arith.constant 4 : index
    %c0_27 = arith.constant 0 : index
    %67 = vector.load %arg3[%c4, %c0_27] : memref<8x256xf32, #tpu.memory_space<vmem>>, vector<1x256xf32>
    %c4_28 = arith.constant 4 : index
    %c0_29 = arith.constant 0 : index
    %68 = vector.load %arg4[%c4_28, %c0_29] : memref<8x256xf32, #tpu.memory_space<vmem>>, vector<1x256xf32>
    %69 = vector.broadcast %68 : vector<1x256xf32> to vector<128x256xf32>
    %70 = arith.subf %66, %69 : vector<128x256xf32>
    %71 = vector.broadcast %67 : vector<1x256xf32> to vector<128x256xf32>
    %72 = arith.mulf %70, %71 : vector<128x256xf32>
    %c0_30 = arith.constant 0 : index
    %c512 = arith.constant 512 : index
    %73 = vector.load %arg1[%c0_30, %c512] : memref<16x1024xbf16, #tpu.memory_space<vmem>>, vector<16x128xbf16>
    %74 = arith.truncf %72 : vector<128x256xf32> to vector<128x256xbf16>
    %cst_31 = arith.constant dense<0.000000e+00> : vector<16x256xf32>
    %75 = tpu.matmul %73, %74, %cst_31 {dimension_numbers = #tpu.dot_dimension_numbers<[1], [0], [0], [1], [0, 0, 1, 1], [], []>} : vector<16x128xbf16>, vector<128x256xbf16>, vector<16x256xf32> -> vector<16x256xf32>
    %76 = arith.addf %61, %75 : vector<16x256xf32>
    %c20_i32 = arith.constant 20 : i32
    %77 = vector.broadcast %c20_i32 : i32 to vector<128x256xi32>
    %78 = arith.shrsi %1, %77 : vector<128x256xi32>
    %c15_i32_32 = arith.constant 15 : i32
    %79 = vector.broadcast %c15_i32_32 : i32 to vector<128x256xi32>
    %80 = arith.andi %78, %79 : vector<128x256xi32>
    %81 = arith.sitofp %80 : vector<128x256xi32> to vector<128x256xf32>
    %c5 = arith.constant 5 : index
    %c0_33 = arith.constant 0 : index
    %82 = vector.load %arg3[%c5, %c0_33] : memref<8x256xf32, #tpu.memory_space<vmem>>, vector<1x256xf32>
    %c5_34 = arith.constant 5 : index
    %c0_35 = arith.constant 0 : index
    %83 = vector.load %arg4[%c5_34, %c0_35] : memref<8x256xf32, #tpu.memory_space<vmem>>, vector<1x256xf32>
    %84 = vector.broadcast %83 : vector<1x256xf32> to vector<128x256xf32>
    %85 = arith.subf %81, %84 : vector<128x256xf32>
    %86 = vector.broadcast %82 : vector<1x256xf32> to vector<128x256xf32>
    %87 = arith.mulf %85, %86 : vector<128x256xf32>
    %c0_36 = arith.constant 0 : index
    %c640 = arith.constant 640 : index
    %88 = vector.load %arg1[%c0_36, %c640] : memref<16x1024xbf16, #tpu.memory_space<vmem>>, vector<16x128xbf16>
    %89 = arith.truncf %87 : vector<128x256xf32> to vector<128x256xbf16>
    %cst_37 = arith.constant dense<0.000000e+00> : vector<16x256xf32>
    %90 = tpu.matmul %88, %89, %cst_37 {dimension_numbers = #tpu.dot_dimension_numbers<[1], [0], [0], [1], [0, 0, 1, 1], [], []>} : vector<16x128xbf16>, vector<128x256xbf16>, vector<16x256xf32> -> vector<16x256xf32>
    %91 = arith.addf %76, %90 : vector<16x256xf32>
    %c24_i32 = arith.constant 24 : i32
    %92 = vector.broadcast %c24_i32 : i32 to vector<128x256xi32>
    %93 = arith.shrsi %1, %92 : vector<128x256xi32>
    %c15_i32_38 = arith.constant 15 : i32
    %94 = vector.broadcast %c15_i32_38 : i32 to vector<128x256xi32>
    %95 = arith.andi %93, %94 : vector<128x256xi32>
    %96 = arith.sitofp %95 : vector<128x256xi32> to vector<128x256xf32>
    %c6 = arith.constant 6 : index
    %c0_39 = arith.constant 0 : index
    %97 = vector.load %arg3[%c6, %c0_39] : memref<8x256xf32, #tpu.memory_space<vmem>>, vector<1x256xf32>
    %c6_40 = arith.constant 6 : index
    %c0_41 = arith.constant 0 : index
    %98 = vector.load %arg4[%c6_40, %c0_41] : memref<8x256xf32, #tpu.memory_space<vmem>>, vector<1x256xf32>
    %99 = vector.broadcast %98 : vector<1x256xf32> to vector<128x256xf32>
    %100 = arith.subf %96, %99 : vector<128x256xf32>
    %101 = vector.broadcast %97 : vector<1x256xf32> to vector<128x256xf32>
    %102 = arith.mulf %100, %101 : vector<128x256xf32>
    %c0_42 = arith.constant 0 : index
    %c768 = arith.constant 768 : index
    %103 = vector.load %arg1[%c0_42, %c768] : memref<16x1024xbf16, #tpu.memory_space<vmem>>, vector<16x128xbf16>
    %104 = arith.truncf %102 : vector<128x256xf32> to vector<128x256xbf16>
    %cst_43 = arith.constant dense<0.000000e+00> : vector<16x256xf32>
    %105 = tpu.matmul %103, %104, %cst_43 {dimension_numbers = #tpu.dot_dimension_numbers<[1], [0], [0], [1], [0, 0, 1, 1], [], []>} : vector<16x128xbf16>, vector<128x256xbf16>, vector<16x256xf32> -> vector<16x256xf32>
    %106 = arith.addf %91, %105 : vector<16x256xf32>
    %c28_i32 = arith.constant 28 : i32
    %107 = vector.broadcast %c28_i32 : i32 to vector<128x256xi32>
    %108 = arith.shrsi %1, %107 : vector<128x256xi32>
    %c15_i32_44 = arith.constant 15 : i32
    %109 = vector.broadcast %c15_i32_44 : i32 to vector<128x256xi32>
    %110 = arith.andi %108, %109 : vector<128x256xi32>
    %111 = arith.sitofp %110 : vector<128x256xi32> to vector<128x256xf32>
    %c7 = arith.constant 7 : index
    %c0_45 = arith.constant 0 : index
    %112 = vector.load %arg3[%c7, %c0_45] : memref<8x256xf32, #tpu.memory_space<vmem>>, vector<1x256xf32>
    %c7_46 = arith.constant 7 : index
    %c0_47 = arith.constant 0 : index
    %113 = vector.load %arg4[%c7_46, %c0_47] : memref<8x256xf32, #tpu.memory_space<vmem>>, vector<1x256xf32>
    %114 = vector.broadcast %113 : vector<1x256xf32> to vector<128x256xf32>
    %115 = arith.subf %111, %114 : vector<128x256xf32>
    %116 = vector.broadcast %112 : vector<1x256xf32> to vector<128x256xf32>
    %117 = arith.mulf %115, %116 : vector<128x256xf32>
    %c0_48 = arith.constant 0 : index
    %c896 = arith.constant 896 : index
    %118 = vector.load %arg1[%c0_48, %c896] : memref<16x1024xbf16, #tpu.memory_space<vmem>>, vector<16x128xbf16>
    %119 = arith.truncf %117 : vector<128x256xf32> to vector<128x256xbf16>
    %cst_49 = arith.constant dense<0.000000e+00> : vector<16x256xf32>
    %120 = tpu.matmul %118, %119, %cst_49 {dimension_numbers = #tpu.dot_dimension_numbers<[1], [0], [0], [1], [0, 0, 1, 1], [], []>} : vector<16x128xbf16>, vector<128x256xbf16>, vector<16x256xf32> -> vector<16x256xf32>
    %121 = arith.addf %106, %120 : vector<16x256xf32>
    %c0_50 = arith.constant 0 : index
    %c0_51 = arith.constant 0 : index
    %122 = vector.load %arg5[%c0_50, %c0_51] : memref<1x256xf32, #tpu.memory_space<vmem>>, vector<1x256xf32>
    %123 = vector.broadcast %122 : vector<1x256xf32> to vector<16x256xf32>
    %124 = arith.addf %121, %123 : vector<16x256xf32>
    %c0_52 = arith.constant 0 : index
    %c0_53 = arith.constant 0 : index
    %125 = vector.load %arg6[%c0_52, %c0_53] : memref<16x256xf32, #tpu.memory_space<vmem>>, vector<16x256xf32>
    tpu.vector_store %arg6[%c0_52, %c0_53], %124 {strides = array<i32>} : memref<16x256xf32, #tpu.memory_space<vmem>>, vector<16x256xf32>,
    return
  }
  func.func @transform_0(%arg0: i32) -> (i32, i32) {
    %c0_i32 = arith.constant 0 : i32
    %c0_i32_0 = arith.constant 0 : i32
    %c0_i32_1 = arith.constant 0 : i32
    return %c0_i32, %c0_i32_0 : i32, i32
  }
  func.func @transform_1(%arg0: i32) -> (i32, i32) {
    %c0_i32 = arith.constant 0 : i32
    %c0_i32_0 = arith.constant 0 : i32
    return %c0_i32, %arg0 : i32, i32
  }
  func.func @transform_2(%arg0: i32) -> (i32, i32) {
    %c0_i32 = arith.constant 0 : i32
    %c0_i32_0 = arith.constant 0 : i32
    return %c0_i32, %arg0 : i32, i32
  }
  func.func @transform_3(%arg0: i32) -> (i32, i32) {
    %c0_i32 = arith.constant 0 : i32
    %c0_i32_0 = arith.constant 0 : i32
    return %c0_i32, %arg0 : i32, i32
  }
  func.func @transform_4(%arg0: i32) -> (i32, i32) {
    %c0_i32 = arith.constant 0 : i32
    %c0_i32_0 = arith.constant 0 : i32
    return %c0_i32, %arg0 : i32, i32
  }
  func.func @transform_5(%arg0: i32) -> (i32, i32) {
    %c0_i32 = arith.constant 0 : i32
    %c0_i32_0 = arith.constant 0 : i32
    return %c0_i32, %arg0 : i32, i32
  }
}

</mosaic_0001>

<llo_original>
// kernel: tpu_custom_call.1
$region0: #{tpu_custom_call.1}
  #allocation0 [shape = 'u32[]', space=smem, size = 0x4, offset = 0x4, fixed_abs, tag = 'smem constant byte address 0x4 - core index']
  #allocation1 [shape = 'u32[144,128]{1,0:T(1,128)}', space=vmem, size = 0x12000, scoped, tag = 'internal scratch']
  %s0 = inlined_call_operand.hbm [shape: bf16[16,1024], index: 0, kind: input, shape index: {}]
  %s1 = inlined_call_operand.hbm [shape: s32[128,256], index: 1, kind: input, shape index: {}]
  %s2 = inlined_call_operand.hbm [shape: f32[8,256], index: 2, kind: input, shape index: {}]
  %s3 = inlined_call_operand.hbm [shape: f32[8,256], index: 3, kind: input, shape index: {}]
  %s4 = inlined_call_operand.vmem [shape: f32[1,256], index: 4, kind: input, shape index: {}]
  %s5 = inlined_call_operand.hbm [shape: f32[16,256], index: 5, kind: output, shape index: {}]
  %s6 = sld [smem:[#allocation0]]
  $region46: #{tpu_custom_call.1} parent=0
    _
  %s8 = ssub.s32 1, %s6
  %s9 = scalar_select 0, %s8, %s6
  $region1: #{tpu_custom_call.1} parent=0
    #allocation2 [shape = 'u8[32768]{0}', space=vmem, size = 0x8000, scoped, tag = 'input window, operand 0, single buffered']
    #allocation3 [shape = 's32[1]{0}', space=sflag, size = 0x4, scoped, tag = 'scoped memory for tpu_custom_call.1']
    #allocation4 [shape = 's32[1]{0}', space=sflag, size = 0x4, scoped, tag = 'scoped memory for tpu_custom_call.1']
    #allocation5 [shape = 'u8[131072]{0}', space=vmem, size = 0x20000, scoped, tag = 'input window, operand 1, single buffered']
    #allocation6 [shape = 's32[1]{0}', space=sflag, size = 0x4, scoped, tag = 'scoped memory for tpu_custom_call.1']
    #allocation7 [shape = 'u8[8192]{0}', space=vmem, size = 0x2000, scoped, tag = 'input window, operand 2, single buffered']
    #allocation8 [shape = 'u8[8192]{0}', space=vmem, size = 0x2000, scoped, tag = 'input window, operand 3, single buffered']
    #allocation9 [shape = 's32[1]{0}', space=sflag, size = 0x4, scoped, tag = 'scoped memory for tpu_custom_call.1']
    #allocation10 [shape = 'u8[16384]{0}', space=vmem, size = 0x4000, scoped, tag = 'output window, operand 0, single buffered']
    %10 = vsyncpa [#allocation3], 0
    %11 = vsyncpa [#allocation6], 0
    %12 = vsyncpa [#allocation9], 0
    %13 = vsyncpa [#allocation4], 0
    // Predicated region
    $region2: #{tpu_custom_call.1} parent=1 // pred_check
      _
    $region3: #{tpu_custom_call.1} parent=1 // pred_check_branch
      %15 = sbr.rel (0) target = $region5
    $region4: #{tpu_custom_call.1} parent=1 // pred_region
      %s17 = ssub.s32 1024, 1024
      %18 = vsyncadd [#allocation3], %s17
      %s19 = sshll.u32 [#allocation2], 4
      %s20 = int_to_ptr.vmem [resolvable:$true] %s19
      %25 = dma.hbm_to_vmem [thread:$0]  %s0, 1024, %s20, [#allocation3], 512, 512, 32
    $region5: #{tpu_custom_call.1} parent=1 // pred_fallthru
      _
    // Predicated region
    $region6: #{tpu_custom_call.1} parent=1 // pred_check
      _
    $region7: #{tpu_custom_call.1} parent=1 // pred_check_branch
      %27 = sbr.rel (0) target = $region9
    $region8: #{tpu_custom_call.1} parent=1 // pred_region
      %s29 = ssub.s32 4096, 4096
      %30 = vsyncadd [#allocation6], %s29
      %s31 = sshll.u32 [#allocation5], 4
      %s32 = int_to_ptr.vmem [resolvable:$true] %s31
      %37 = dma.hbm_to_vmem [thread:$0]  %s1, 4096, %s32, [#allocation6], 256, 256, 16
    $region9: #{tpu_custom_call.1} parent=1 // pred_fallthru
      _
    // Predicated region
    $region10: #{tpu_custom_call.1} parent=1 // pred_check
      _
    $region11: #{tpu_custom_call.1} parent=1 // pred_check_branch
      %39 = sbr.rel (0) target = $region13
    $region12: #{tpu_custom_call.1} parent=1 // pred_region
      %s41 = ssub.s32 256, 256
      %42 = vsyncadd [#allocation6], %s41
      %s44 = sshll.u32 [#allocation7], 4
      %s45 = int_to_ptr.vmem [resolvable:$true] %s44
      %47 = dma.hbm_to_vmem [thread:$0]  %s2, 256, %s45, [#allocation6]
    $region13: #{tpu_custom_call.1} parent=1 // pred_fallthru
      _
    // Predicated region
    $region14: #{tpu_custom_call.1} parent=1 // pred_check
      _
    $region15: #{tpu_custom_call.1} parent=1 // pred_check_branch
      %49 = sbr.rel (0) target = $region17
    $region16: #{tpu_custom_call.1} parent=1 // pred_region
      %s51 = ssub.s32 256, 256
      %52 = vsyncadd [#allocation9], %s51
      %s54 = sshll.u32 [#allocation8], 4
      %s55 = int_to_ptr.vmem [resolvable:$true] %s54
      %57 = dma.hbm_to_vmem [thread:$0]  %s3, 256, %s55, [#allocation9]
    $region17: #{tpu_custom_call.1} parent=1 // pred_fallthru
      _
    // Predicated region
    $region18: #{tpu_custom_call.1} parent=1 // pred_check
      _
    $region19: #{tpu_custom_call.1} parent=1 // pred_check_branch
      %59 = sbr.rel (0) target = $region21
    $region20: #{tpu_custom_call.1} parent=1 // pred_region
      _
    $region21: #{tpu_custom_call.1} parent=1 // pred_fallthru
      _
    // Predicated region
    $region22: #{tpu_custom_call.1} parent=1 // pred_check
      _
    $region23: #{tpu_custom_call.1} parent=1 // pred_check_branch
      %61 = sbr.rel (0) target = $region25
    $region24: #{tpu_custom_call.1} parent=1 // pred_region
      %62 = dma.done [#allocation3], 1024
    $region25: #{tpu_custom_call.1} parent=1 // pred_fallthru
      _
    // Predicated region
    $region26: #{tpu_custom_call.1} parent=1 // pred_check
      _
    $region27: #{tpu_custom_call.1} parent=1 // pred_check_branch
      %64 = sbr.rel (0) target = $region29
    $region28: #{tpu_custom_call.1} parent=1 // pred_region
      %65 = dma.done [#allocation6], 4096
    $region29: #{tpu_custom_call.1} parent=1 // pred_fallthru
      _
    // Predicated region
    $region30: #{tpu_custom_call.1} parent=1 // pred_check
      _
    $region31: #{tpu_custom_call.1} parent=1 // pred_check_branch
      %67 = sbr.rel (0) target = $region33
    $region32: #{tpu_custom_call.1} parent=1 // pred_region
      %68 = dma.done [#allocation6], 256
    $region33: #{tpu_custom_call.1} parent=1 // pred_fallthru
      _
    // Predicated region
    $region34: #{tpu_custom_call.1} parent=1 // pred_check
      _
    $region35: #{tpu_custom_call.1} parent=1 // pred_check_branch
      %70 = sbr.rel (0) target = $region37
    $region36: #{tpu_custom_call.1} parent=1 // pred_region
      %71 = dma.done [#allocation9], 256
    $region37: #{tpu_custom_call.1} parent=1 // pred_fallthru
      _
    %v73 = vld [vmem:[#allocation5] sm:$0xff]
    %v74 = vld [vmem:[#allocation5 + $0x8] sm:$0xff]
    %v75 = vld [vmem:[#allocation5 + $0x10] sm:$0xff]
    %v76 = vld [vmem:[#allocation5 + $0x18] sm:$0xff]
    %v77 = vld [vmem:[#allocation5 + $0x20] sm:$0xff]
    %v78 = vld [vmem:[#allocation5 + $0x28] sm:$0xff]
    %v79 = vld [vmem:[#allocation5 + $0x30] sm:$0xff]
    %v80 = vld [vmem:[#allocation5 + $0x38] sm:$0xff]
    %v81 = vld [vmem:[#allocation5 + $0x40] sm:$0xff]
    %v82 = vld [vmem:[#allocation5 + $0x48] sm:$0xff]
    %v83 = vld [vmem:[#allocation5 + $0x50] sm:$0xff]
    %v84 = vld [vmem:[#allocation5 + $0x58] sm:$0xff]
    %v85 = vld [vmem:[#allocation5 + $0x60] sm:$0xff]
    %v86 = vld [vmem:[#allocation5 + $0x68] sm:$0xff]
    %v87 = vld [vmem:[#allocation5 + $0x70] sm:$0xff]
    %v88 = vld [vmem:[#allocation5 + $0x78] sm:$0xff]
    %v89 = vld [vmem:[#allocation5 + $0x80] sm:$0xff]
    %v90 = vld [vmem:[#allocation5 + $0x88] sm:$0xff]
    %v91 = vld [vmem:[#allocation5 + $0x90] sm:$0xff]
    %v92 = vld [vmem:[#allocation5 + $0x98] sm:$0xff]
    %v93 = vld [vmem:[#allocation5 + $0xa0] sm:$0xff]
    %v94 = vld [vmem:[#allocation5 + $0xa8] sm:$0xff]
    %v95 = vld [vmem:[#allocation5 + $0xb0] sm:$0xff]
    %v96 = vld [vmem:[#allocation5 + $0xb8] sm:$0xff]
    %v97 = vld [vmem:[#allocation5 + $0xc0] sm:$0xff]
    %v98 = vld [vmem:[#allocation5 + $0xc8] sm:$0xff]
    %v99 = vld [vmem:[#allocation5 + $0xd0] sm:$0xff]
    %v100 = vld [vmem:[#allocation5 + $0xd8] sm:$0xff]
    %v101 = vld [vmem:[#allocation5 + $0xe0] sm:$0xff]
    %v102 = vld [vmem:[#allocation5 + $0xe8] sm:$0xff]
    %v103 = vld [vmem:[#allocation5 + $0xf0] sm:$0xff]
    %v104 = vld [vmem:[#allocation5 + $0xf8] sm:$0xff]
    %v105 = vand.u32 %v73, 15
    %v106 = vand.u32 %v74, 15
    %v107 = vand.u32 %v75, 15
    %v108 = vand.u32 %v76, 15
    %v109 = vand.u32 %v77, 15
    %v110 = vand.u32 %v78, 15
    %v111 = vand.u32 %v79, 15
    %v112 = vand.u32 %v80, 15
    %v113 = vand.u32 %v81, 15
    %v114 = vand.u32 %v82, 15
    %v115 = vand.u32 %v83, 15
    %v116 = vand.u32 %v84, 15
    %v117 = vand.u32 %v85, 15
    %v118 = vand.u32 %v86, 15
    %v119 = vand.u32 %v87, 15
    %v120 = vand.u32 %v88, 15
    %v121 = vand.u32 %v89, 15
    %v122 = vand.u32 %v90, 15
    %v123 = vand.u32 %v91, 15
    %v124 = vand.u32 %v92, 15
    %v125 = vand.u32 %v93, 15
    %v126 = vand.u32 %v94, 15
    %v127 = vand.u32 %v95, 15
    %v128 = vand.u32 %v96, 15
    %v129 = vand.u32 %v97, 15
    %v130 = vand.u32 %v98, 15
    %v131 = vand.u32 %v99, 15
    %v132 = vand.u32 %v100, 15
    %v133 = vand.u32 %v101, 15
    %v134 = vand.u32 %v102, 15
    %v135 = vand.u32 %v103, 15
    %v136 = vand.u32 %v104, 15
    %v137 = vcvt.s32.f32 %v105
    %v138 = vcvt.s32.f32 %v106
    %v139 = vcvt.s32.f32 %v107
    %v140 = vcvt.s32.f32 %v108
    %v141 = vcvt.s32.f32 %v109
    %v142 = vcvt.s32.f32 %v110
    %v143 = vcvt.s32.f32 %v111
    %v144 = vcvt.s32.f32 %v112
    %v145 = vcvt.s32.f32 %v113
    %v146 = vcvt.s32.f32 %v114
    %v147 = vcvt.s32.f32 %v115
    %v148 = vcvt.s32.f32 %v116
    %v149 = vcvt.s32.f32 %v117
    %v150 = vcvt.s32.f32 %v118
    %v151 = vcvt.s32.f32 %v119
    %v152 = vcvt.s32.f32 %v120
    %v153 = vcvt.s32.f32 %v121
    %v154 = vcvt.s32.f32 %v122
    %v155 = vcvt.s32.f32 %v123
    %v156 = vcvt.s32.f32 %v124
    %v157 = vcvt.s32.f32 %v125
    %v158 = vcvt.s32.f32 %v126
    %v159 = vcvt.s32.f32 %v127
    %v160 = vcvt.s32.f32 %v128
    %v161 = vcvt.s32.f32 %v129
    %v162 = vcvt.s32.f32 %v130
    %v163 = vcvt.s32.f32 %v131
    %v164 = vcvt.s32.f32 %v132
    %v165 = vcvt.s32.f32 %v133
    %v166 = vcvt.s32.f32 %v134
    %v167 = vcvt.s32.f32 %v135
    %v168 = vcvt.s32.f32 %v136
    %v169 = vld [vmem:[#allocation7] ss:$8 sm:$0x3]
    %v170 = vld [vmem:[#allocation8] ss:$8 sm:$0x3]
    %v172 = vlaneseq
    %v173 = vshrl.u32 %v172, 7
    %v174 = vsub.s32 0, %v173
    %v175 = vrot.slane %v170, %v174
    %v176 = vlaneseq
    %v177 = vshrl.u32 %v176, 7
    %v178 = vsub.s32 1, %v177
    %v179 = vrot.slane %v170, %v178
    %v182 = vsub.f32 %v137, %v175
    %v183 = vsub.f32 %v138, %v179
    %v184 = vsub.f32 %v139, %v175
    %v185 = vsub.f32 %v140, %v179
    %v186 = vsub.f32 %v141, %v175
    %v187 = vsub.f32 %v142, %v179
    %v188 = vsub.f32 %v143, %v175
    %v189 = vsub.f32 %v144, %v179
    %v190 = vsub.f32 %v145, %v175
    %v191 = vsub.f32 %v146, %v179
    %v192 = vsub.f32 %v147, %v175
    %v193 = vsub.f32 %v148, %v179
    %v194 = vsub.f32 %v149, %v175
    %v195 = vsub.f32 %v150, %v179
    %v196 = vsub.f32 %v151, %v175
    %v197 = vsub.f32 %v152, %v179
    %v198 = vsub.f32 %v153, %v175
    %v199 = vsub.f32 %v154, %v179
    %v200 = vsub.f32 %v155, %v175
    %v201 = vsub.f32 %v156, %v179
    %v202 = vsub.f32 %v157, %v175
    %v203 = vsub.f32 %v158, %v179
    %v204 = vsub.f32 %v159, %v175
    %v205 = vsub.f32 %v160, %v179
    %v206 = vsub.f32 %v161, %v175
    %v207 = vsub.f32 %v162, %v179
    %v208 = vsub.f32 %v163, %v175
    %v209 = vsub.f32 %v164, %v179
    %v210 = vsub.f32 %v165, %v175
    %v211 = vsub.f32 %v166, %v179
    %v212 = vsub.f32 %v167, %v175
    %v213 = vsub.f32 %v168, %v179
    %v215 = vlaneseq
    %v216 = vshrl.u32 %v215, 7
    %v217 = vsub.s32 0, %v216
    %v218 = vrot.slane %v169, %v217
    %v219 = vlaneseq
    %v220 = vshrl.u32 %v219, 7
    %v221 = vsub.s32 1, %v220
    %v222 = vrot.slane %v169, %v221
    %v225 = vmul.f32 %v182, %v218
    %v226 = vmul.f32 %v183, %v222
    %v227 = vmul.f32 %v184, %v218
    %v228 = vmul.f32 %v185, %v222
    %v229 = vmul.f32 %v186, %v218
    %v230 = vmul.f32 %v187, %v222
    %v231 = vmul.f32 %v188, %v218
    %v232 = vmul.f32 %v189, %v222
    %v233 = vmul.f32 %v190, %v218
    %v234 = vmul.f32 %v191, %v222
    %v235 = vmul.f32 %v192, %v218
    %v236 = vmul.f32 %v193, %v222
    %v237 = vmul.f32 %v194, %v218
    %v238 = vmul.f32 %v195, %v222
    %v239 = vmul.f32 %v196, %v218
    %v240 = vmul.f32 %v197, %v222
    %v241 = vmul.f32 %v198, %v218
    %v242 = vmul.f32 %v199, %v222
    %v243 = vmul.f32 %v200, %v218
    %v244 = vmul.f32 %v201, %v222
    %v245 = vmul.f32 %v202, %v218
    %v246 = vmul.f32 %v203, %v222
    %v247 = vmul.f32 %v204, %v218
    %v248 = vmul.f32 %v205, %v222
    %v249 = vmul.f32 %v206, %v218
    %v250 = vmul.f32 %v207, %v222
    %v251 = vmul.f32 %v208, %v218
    %v252 = vmul.f32 %v209, %v222
    %v253 = vmul.f32 %v210, %v218
    %v254 = vmul.f32 %v211, %v222
    %v255 = vmul.f32 %v212, %v218
    %v256 = vmul.f32 %v213, %v222
    %v257 = vld [vmem:[#allocation2] sm:$0xf]
    %v258 = vld [vmem:[#allocation2 + $0x20] sm:$0xf]
    %v259 = vpack.c.bf16 %v227, %v225
    %v260 = vpack.c.bf16 %v228, %v226
    %v261 = vpack.c.bf16 %v231, %v229
    %v262 = vpack.c.bf16 %v232, %v230
    %v263 = vpack.c.bf16 %v235, %v233
    %v264 = vpack.c.bf16 %v236, %v234
    %v265 = vpack.c.bf16 %v239, %v237
    %v266 = vpack.c.bf16 %v240, %v238
    %v267 = vpack.c.bf16 %v243, %v241
    %v268 = vpack.c.bf16 %v244, %v242
    %v269 = vpack.c.bf16 %v247, %v245
    %v270 = vpack.c.bf16 %v248, %v246
    %v271 = vpack.c.bf16 %v251, %v249
    %v272 = vpack.c.bf16 %v252, %v250
    %v273 = vpack.c.bf16 %v255, %v253
    %v274 = vpack.c.bf16 %v256, %v254
    %v275 = vshra.s32 %v73, 4
    %v276 = vshra.s32 %v74, 4
    %v277 = vshra.s32 %v75, 4
    %v278 = vshra.s32 %v76, 4
    %v279 = vshra.s32 %v77, 4
    %v280 = vshra.s32 %v78, 4
    %v281 = vshra.s32 %v79, 4
    %v282 = vshra.s32 %v80, 4
    %v283 = vshra.s32 %v81, 4
    %v284 = vshra.s32 %v82, 4
    %v285 = vshra.s32 %v83, 4
    %v286 = vshra.s32 %v84, 4
    %v287 = vshra.s32 %v85, 4
    %v288 = vshra.s32 %v86, 4
    %v289 = vshra.s32 %v87, 4
    %v290 = vshra.s32 %v88, 4
    %v291 = vshra.s32 %v89, 4
    %v292 = vshra.s32 %v90, 4
    %v293 = vshra.s32 %v91, 4
    %v294 = vshra.s32 %v92, 4
    %v295 = vshra.s32 %v93, 4
    %v296 = vshra.s32 %v94, 4
    %v297 = vshra.s32 %v95, 4
    %v298 = vshra.s32 %v96, 4
    %v299 = vshra.s32 %v97, 4
    %v300 = vshra.s32 %v98, 4
    %v301 = vshra.s32 %v99, 4
    %v302 = vshra.s32 %v100, 4
    %v303 = vshra.s32 %v101, 4
    %v304 = vshra.s32 %v102, 4
    %v305 = vshra.s32 %v103, 4
    %v306 = vshra.s32 %v104, 4
    %v307 = vand.u32 %v275, 15
    %v308 = vand.u32 %v276, 15
    %v309 = vand.u32 %v277, 15
    %v310 = vand.u32 %v278, 15
    %v311 = vand.u32 %v279, 15
    %v312 = vand.u32 %v280, 15
    %v313 = vand.u32 %v281, 15
    %v314 = vand.u32 %v282, 15
    %v315 = vand.u32 %v283, 15
    %v316 = vand.u32 %v284, 15
    %v317 = vand.u32 %v285, 15
    %v318 = vand.u32 %v286, 15
    %v319 = vand.u32 %v287, 15
    %v320 = vand.u32 %v288, 15
    %v321 = vand.u32 %v289, 15
    %v322 = vand.u32 %v290, 15
    %v323 = vand.u32 %v291, 15
    %v324 = vand.u32 %v292, 15
    %v325 = vand.u32 %v293, 15
    %v326 = vand.u32 %v294, 15
    %v327 = vand.u32 %v295, 15
    %v328 = vand.u32 %v296, 15
    %v329 = vand.u32 %v297, 15
    %v330 = vand.u32 %v298, 15
    %v331 = vand.u32 %v299, 15
    %v332 = vand.u32 %v300, 15
    %v333 = vand.u32 %v301, 15
    %v334 = vand.u32 %v302, 15
    %v335 = vand.u32 %v303, 15
    %v336 = vand.u32 %v304, 15
    %v337 = vand.u32 %v305, 15
    %v338 = vand.u32 %v306, 15
    %v339 = vcvt.s32.f32 %v307
    %v340 = vcvt.s32.f32 %v308
    %v341 = vcvt.s32.f32 %v309
    %v342 = vcvt.s32.f32 %v310
    %v343 = vcvt.s32.f32 %v311
    %v344 = vcvt.s32.f32 %v312
    %v345 = vcvt.s32.f32 %v313
    %v346 = vcvt.s32.f32 %v314
    %v347 = vcvt.s32.f32 %v315
    %v348 = vcvt.s32.f32 %v316
    %v349 = vcvt.s32.f32 %v317
    %v350 = vcvt.s32.f32 %v318
    %v351 = vcvt.s32.f32 %v319
    %v352 = vcvt.s32.f32 %v320
    %v353 = vcvt.s32.f32 %v321
    %v354 = vcvt.s32.f32 %v322
    %v355 = vcvt.s32.f32 %v323
    %v356 = vcvt.s32.f32 %v324
    %v357 = vcvt.s32.f32 %v325
    %v358 = vcvt.s32.f32 %v326
    %v359 = vcvt.s32.f32 %v327
    %v360 = vcvt.s32.f32 %v328
    %v361 = vcvt.s32.f32 %v329
    %v362 = vcvt.s32.f32 %v330
    %v363 = vcvt.s32.f32 %v331
    %v364 = vcvt.s32.f32 %v332
    %v365 = vcvt.s32.f32 %v333
    %v366 = vcvt.s32.f32 %v334
    %v367 = vcvt.s32.f32 %v335
    %v368 = vcvt.s32.f32 %v336
    %v369 = vcvt.s32.f32 %v337
    %v370 = vcvt.s32.f32 %v338
    %s371 = scalar_lea.vmem [#allocation7], 1
    %v372 = vld [vmem:[%s371] ss:$8 sm:$0x3]
    %s373 = scalar_lea.vmem [#allocation8], 1
    %v374 = vld [vmem:[%s373] ss:$8 sm:$0x3]
    %v376 = vlaneseq
    %v377 = vshrl.u32 %v376, 7
    %v378 = vsub.s32 0, %v377
    %v379 = vrot.slane %v374, %v378
    %v380 = vlaneseq
    %v381 = vshrl.u32 %v380, 7
    %v382 = vsub.s32 1, %v381
    %v383 = vrot.slane %v374, %v382
    %v386 = vsub.f32 %v339, %v379
    %v387 = vsub.f32 %v340, %v383
    %v388 = vsub.f32 %v341, %v379
    %v389 = vsub.f32 %v342, %v383
    %v390 = vsub.f32 %v343, %v379
    %v391 = vsub.f32 %v344, %v383
    %v392 = vsub.f32 %v345, %v379
    %v393 = vsub.f32 %v346, %v383
    %v394 = vsub.f32 %v347, %v379
    %v395 = vsub.f32 %v348, %v383
    %v396 = vsub.f32 %v349, %v379
    %v397 = vsub.f32 %v350, %v383
    %v398 = vsub.f32 %v351, %v379
    %v399 = vsub.f32 %v352, %v383
    %v400 = vsub.f32 %v353, %v379
    %v401 = vsub.f32 %v354, %v383
    %v402 = vsub.f32 %v355, %v379
    %v403 = vsub.f32 %v356, %v383
    %v404 = vsub.f32 %v357, %v379
    %v405 = vsub.f32 %v358, %v383
    %v406 = vsub.f32 %v359, %v379
    %v407 = vsub.f32 %v360, %v383
    %v408 = vsub.f32 %v361, %v379
    %v409 = vsub.f32 %v362, %v383
    %v410 = vsub.f32 %v363, %v379
    %v411 = vsub.f32 %v364, %v383
    %v412 = vsub.f32 %v365, %v379
    %v413 = vsub.f32 %v366, %v383
    %v414 = vsub.f32 %v367, %v379
    %v415 = vsub.f32 %v368, %v383
    %v416 = vsub.f32 %v369, %v379
    %v417 = vsub.f32 %v370, %v383
    %v419 = vlaneseq
    %v420 = vshrl.u32 %v419, 7
    %v421 = vsub.s32 0, %v420
    %v422 = vrot.slane %v372, %v421
    %v423 = vlaneseq
    %v424 = vshrl.u32 %v423, 7
    %v425 = vsub.s32 1, %v424
    %v426 = vrot.slane %v372, %v425
    %v429 = vmul.f32 %v386, %v422
    %v430 = vmul.f32 %v387, %v426
    %v431 = vmul.f32 %v388, %v422
    %v432 = vmul.f32 %v389, %v426
    %v433 = vmul.f32 %v390, %v422
    %v434 = vmul.f32 %v391, %v426
    %v435 = vmul.f32 %v392, %v422
    %v436 = vmul.f32 %v393, %v426
    %v437 = vmul.f32 %v394, %v422
    %v438 = vmul.f32 %v395, %v426
    %v439 = vmul.f32 %v396, %v422
    %v440 = vmul.f32 %v397, %v426
    %v441 = vmul.f32 %v398, %v422
    %v442 = vmul.f32 %v399, %v426
    %v443 = vmul.f32 %v400, %v422
    %v444 = vmul.f32 %v401, %v426
    %v445 = vmul.f32 %v402, %v422
    %v446 = vmul.f32 %v403, %v426
    %v447 = vmul.f32 %v404, %v422
    %v448 = vmul.f32 %v405, %v426
    %v449 = vmul.f32 %v406, %v422
    %v450 = vmul.f32 %v407, %v426
    %v451 = vmul.f32 %v408, %v422
    %v452 = vmul.f32 %v409, %v426
    %v453 = vmul.f32 %v410, %v422
    %v454 = vmul.f32 %v411, %v426
    %v455 = vmul.f32 %v412, %v422
    %v456 = vmul.f32 %v413, %v426
    %v457 = vmul.f32 %v414, %v422
    %v458 = vmul.f32 %v415, %v426
    %v459 = vmul.f32 %v416, %v422
    %v460 = vmul.f32 %v417, %v426
    %v461 = vld [vmem:[#allocation2 + $0x4] sm:$0xf]
    %v462 = vld [vmem:[#allocation2 + $0x24] sm:$0xf]
    %v463 = vpack.c.bf16 %v431, %v429
    %v464 = vpack.c.bf16 %v432, %v430
    %v465 = vpack.c.bf16 %v435, %v433
    %v466 = vpack.c.bf16 %v436, %v434
    %v467 = vpack.c.bf16 %v439, %v437
    %v468 = vpack.c.bf16 %v440, %v438
    %v469 = vpack.c.bf16 %v443, %v441
    %v470 = vpack.c.bf16 %v444, %v442
    %v471 = vpack.c.bf16 %v447, %v445
    %v472 = vpack.c.bf16 %v448, %v446
    %v473 = vpack.c.bf16 %v451, %v449
    %v474 = vpack.c.bf16 %v452, %v450
    %v475 = vpack.c.bf16 %v455, %v453
    %v476 = vpack.c.bf16 %v456, %v454
    %v477 = vpack.c.bf16 %v459, %v457
    %v478 = vpack.c.bf16 %v460, %v458
    %v481 = vunpack.c.l.b16 %v461
    %v482 = vunpack.c.l.b16 %v462
    %v483 = vpack.c.b16 %v482, %v481
    %485 = vmatprep.subr.bf16.mxu0 %v464
    %486 = vmatpush1.bf16.msra.mxu0 %v463
    %487 = vmatprep.subr.bf16.mxu0 %v466
    %488 = vmatpush1.bf16.msra.mxu0 %v465
    %489 = vmatprep.subr.bf16.mxu0 %v468
    %490 = vmatpush1.bf16.msra.mxu0 %v467
    %491 = vmatprep.subr.bf16.mxu0 %v470
    %492 = vmatpush1.bf16.msra.mxu0 %v469
    %493 = vmatprep.subr.bf16.mxu0 %v472
    %494 = vmatpush1.bf16.msra.mxu0 %v471
    %495 = vmatprep.subr.bf16.mxu0 %v474
    %496 = vmatpush1.bf16.msra.mxu0 %v473
    %497 = vmatprep.subr.bf16.mxu0 %v476
    %498 = vmatpush1.bf16.msra.mxu0 %v475
    %499 = vmatprep.subr.bf16.mxu0 %v478
    %500 = vmatpush1.bf16.msra.mxu0 %v477
    %501 = vmatprep.subr.bf16.mxu0 0
    %502 = vmatpush1.bf16.msra.mxu0 0
    %503 = vmatprep.subr.bf16.mxu0 0
    %504 = vmatpush1.bf16.msra.mxu0 0
    %505 = vmatprep.subr.bf16.mxu0 0
    %506 = vmatpush1.bf16.msra.mxu0 0
    %507 = vmatprep.subr.bf16.mxu0 0
    %508 = vmatpush1.bf16.msra.mxu0 0
    %509 = vmatprep.subr.bf16.mxu0 0
    %510 = vmatpush1.bf16.msra.mxu0 0
    %511 = vmatprep.subr.bf16.mxu0 0
    %512 = vmatpush1.bf16.msra.mxu0 0
    %513 = vmatprep.subr.bf16.mxu0 0
    %514 = vmatpush1.bf16.msra.mxu0 0
    %515 = vmatprep.subr.bf16.mxu0 0
    %516 = vmatpush1.bf16.msra.mxu0 0
    %517 = vmatprep.mubr.bf16.mxu0 0
    %518 = vmatmul.mubr.bf16.gmra.mrb[0].mxu0 %v483
    %v519 = vpop.f32.mrb[0].mxu0
    %v520 = vadd.f32 0.0, %v519
    %v521 = vpop.f32.mrb[0].mxu0
    %v522 = vadd.f32 0.0, %v521
    %v523 = vpop.f32.mrb[0].mxu0
    %v524 = vadd.f32 0.0, %v523
    %v525 = vpop.f32.mrb[0].mxu0
    %v526 = vadd.f32 0.0, %v525
    %527 = vdwg.mxu0
    %v530 = vunpack.c.l.b16 %v257
    %v531 = vunpack.c.l.b16 %v258
    %v532 = vpack.c.b16 %v531, %v530
    %534 = vmatprep.subr.bf16.mxu0 %v260
    %535 = vmatpush1.bf16.msra.mxu0 %v259
    %536 = vmatprep.subr.bf16.mxu0 %v262
    %537 = vmatpush1.bf16.msra.mxu0 %v261
    %538 = vmatprep.subr.bf16.mxu0 %v264
    %539 = vmatpush1.bf16.msra.mxu0 %v263
    %540 = vmatprep.subr.bf16.mxu0 %v266
    %541 = vmatpush1.bf16.msra.mxu0 %v265
    %542 = vmatprep.subr.bf16.mxu0 %v268
    %543 = vmatpush1.bf16.msra.mxu0 %v267
    %544 = vmatprep.subr.bf16.mxu0 %v270
    %545 = vmatpush1.bf16.msra.mxu0 %v269
    %546 = vmatprep.subr.bf16.mxu0 %v272
    %547 = vmatpush1.bf16.msra.mxu0 %v271
    %548 = vmatprep.subr.bf16.mxu0 %v274
    %549 = vmatpush1.bf16.msra.mxu0 %v273
    %550 = vmatprep.subr.bf16.mxu0 0
    %551 = vmatpush1.bf16.msra.mxu0 0
    %552 = vmatprep.subr.bf16.mxu0 0
    %553 = vmatpush1.bf16.msra.mxu0 0
    %554 = vmatprep.subr.bf16.mxu0 0
    %555 = vmatpush1.bf16.msra.mxu0 0
    %556 = vmatprep.subr.bf16.mxu0 0
    %557 = vmatpush1.bf16.msra.mxu0 0
    %558 = vmatprep.subr.bf16.mxu0 0
    %559 = vmatpush1.bf16.msra.mxu0 0
    %560 = vmatprep.subr.bf16.mxu0 0
    %561 = vmatpush1.bf16.msra.mxu0 0
    %562 = vmatprep.subr.bf16.mxu0 0
    %563 = vmatpush1.bf16.msra.mxu0 0
    %564 = vmatprep.subr.bf16.mxu0 0
    %565 = vmatpush1.bf16.msra.mxu0 0
    %566 = vmatprep.mubr.bf16.mxu0 0
    %567 = vmatmul.mubr.bf16.gmra.mrb[0].mxu0 %v532
    %v568 = vpop.f32.mrb[0].mxu0
    %v569 = vadd.f32 %v520, %v568
    %v570 = vpop.f32.mrb[0].mxu0
    %v571 = vadd.f32 %v522, %v570
    %v572 = vpop.f32.mrb[0].mxu0
    %v573 = vadd.f32 %v524, %v572
    %v574 = vpop.f32.mrb[0].mxu0
    %v575 = vadd.f32 %v526, %v574
    %576 = vdwg.mxu0
    %v577 = vshra.s32 %v73, 8
    %v578 = vshra.s32 %v74, 8
    %v579 = vshra.s32 %v75, 8
    %v580 = vshra.s32 %v76, 8
    %v581 = vshra.s32 %v77, 8
    %v582 = vshra.s32 %v78, 8
    %v583 = vshra.s32 %v79, 8
    %v584 = vshra.s32 %v80, 8
    %v585 = vshra.s32 %v81, 8
    %v586 = vshra.s32 %v82, 8
    %v587 = vshra.s32 %v83, 8
    %v588 = vshra.s32 %v84, 8
    %v589 = vshra.s32 %v85, 8
    %v590 = vshra.s32 %v86, 8
    %v591 = vshra.s32 %v87, 8
    %v592 = vshra.s32 %v88, 8
    %v593 = vshra.s32 %v89, 8
    %v594 = vshra.s32 %v90, 8
    %v595 = vshra.s32 %v91, 8
    %v596 = vshra.s32 %v92, 8
    %v597 = vshra.s32 %v93, 8
    %v598 = vshra.s32 %v94, 8
    %v599 = vshra.s32 %v95, 8
    %v600 = vshra.s32 %v96, 8
    %v601 = vshra.s32 %v97, 8
    %v602 = vshra.s32 %v98, 8
    %v603 = vshra.s32 %v99, 8
    %v604 = vshra.s32 %v100, 8
    %v605 = vshra.s32 %v101, 8
    %v606 = vshra.s32 %v102, 8
    %v607 = vshra.s32 %v103, 8
    %v608 = vshra.s32 %v104, 8
    %v609 = vand.u32 %v577, 15
    %v610 = vand.u32 %v578, 15
    %v611 = vand.u32 %v579, 15
    %v612 = vand.u32 %v580, 15
    %v613 = vand.u32 %v581, 15
    %v614 = vand.u32 %v582, 15
    %v615 = vand.u32 %v583, 15
    %v616 = vand.u32 %v584, 15
    %v617 = vand.u32 %v585, 15
    %v618 = vand.u32 %v586, 15
    %v619 = vand.u32 %v587, 15
    %v620 = vand.u32 %v588, 15
    %v621 = vand.u32 %v589, 15
    %v622 = vand.u32 %v590, 15
    %v623 = vand.u32 %v591, 15
    %v624 = vand.u32 %v592, 15
    %v625 = vand.u32 %v593, 15
    %v626 = vand.u32 %v594, 15
    %v627 = vand.u32 %v595, 15
    %v628 = vand.u32 %v596, 15
    %v629 = vand.u32 %v597, 15
    %v630 = vand.u32 %v598, 15
    %v631 = vand.u32 %v599, 15
    %v632 = vand.u32 %v600, 15
    %v633 = vand.u32 %v601, 15
    %v634 = vand.u32 %v602, 15
    %v635 = vand.u32 %v603, 15
    %v636 = vand.u32 %v604, 15
    %v637 = vand.u32 %v605, 15
    %v638 = vand.u32 %v606, 15
    %v639 = vand.u32 %v607, 15
    %v640 = vand.u32 %v608, 15
    %v641 = vcvt.s32.f32 %v609
    %v642 = vcvt.s32.f32 %v610
    %v643 = vcvt.s32.f32 %v611
    %v644 = vcvt.s32.f32 %v612
    %v645 = vcvt.s32.f32 %v613
    %v646 = vcvt.s32.f32 %v614
    %v647 = vcvt.s32.f32 %v615
    %v648 = vcvt.s32.f32 %v616
    %v649 = vcvt.s32.f32 %v617
    %v650 = vcvt.s32.f32 %v618
    %v651 = vcvt.s32.f32 %v619
    %v652 = vcvt.s32.f32 %v620
    %v653 = vcvt.s32.f32 %v621
    %v654 = vcvt.s32.f32 %v622
    %v655 = vcvt.s32.f32 %v623
    %v656 = vcvt.s32.f32 %v624
    %v657 = vcvt.s32.f32 %v625
    %v658 = vcvt.s32.f32 %v626
    %v659 = vcvt.s32.f32 %v627
    %v660 = vcvt.s32.f32 %v628
    %v661 = vcvt.s32.f32 %v629
    %v662 = vcvt.s32.f32 %v630
    %v663 = vcvt.s32.f32 %v631
    %v664 = vcvt.s32.f32 %v632
    %v665 = vcvt.s32.f32 %v633
    %v666 = vcvt.s32.f32 %v634
    %v667 = vcvt.s32.f32 %v635
    %v668 = vcvt.s32.f32 %v636
    %v669 = vcvt.s32.f32 %v637
    %v670 = vcvt.s32.f32 %v638
    %v671 = vcvt.s32.f32 %v639
    %v672 = vcvt.s32.f32 %v640
    %s673 = scalar_lea.vmem [#allocation7], 2
    %v674 = vld [vmem:[%s673] ss:$8 sm:$0x3]
    %s675 = scalar_lea.vmem [#allocation8], 2
    %v676 = vld [vmem:[%s675] ss:$8 sm:$0x3]
    %v678 = vlaneseq
    %v679 = vshrl.u32 %v678, 7
    %v680 = vsub.s32 0, %v679
    %v681 = vrot.slane %v676, %v680
    %v682 = vlaneseq
    %v683 = vshrl.u32 %v682, 7
    %v684 = vsub.s32 1, %v683
    %v685 = vrot.slane %v676, %v684
    %v688 = vsub.f32 %v641, %v681
    %v689 = vsub.f32 %v642, %v685
    %v690 = vsub.f32 %v643, %v681
    %v691 = vsub.f32 %v644, %v685
    %v692 = vsub.f32 %v645, %v681
    %v693 = vsub.f32 %v646, %v685
    %v694 = vsub.f32 %v647, %v681
    %v695 = vsub.f32 %v648, %v685
    %v696 = vsub.f32 %v649, %v681
    %v697 = vsub.f32 %v650, %v685
    %v698 = vsub.f32 %v651, %v681
    %v699 = vsub.f32 %v652, %v685
    %v700 = vsub.f32 %v653, %v681
    %v701 = vsub.f32 %v654, %v685
    %v702 = vsub.f32 %v655, %v681
    %v703 = vsub.f32 %v656, %v685
    %v704 = vsub.f32 %v657, %v681
    %v705 = vsub.f32 %v658, %v685
    %v706 = vsub.f32 %v659, %v681
    %v707 = vsub.f32 %v660, %v685
    %v708 = vsub.f32 %v661, %v681
    %v709 = vsub.f32 %v662, %v685
    %v710 = vsub.f32 %v663, %v681
    %v711 = vsub.f32 %v664, %v685
    %v712 = vsub.f32 %v665, %v681
    %v713 = vsub.f32 %v666, %v685
    %v714 = vsub.f32 %v667, %v681
    %v715 = vsub.f32 %v668, %v685
    %v716 = vsub.f32 %v669, %v681
    %v717 = vsub.f32 %v670, %v685
    %v718 = vsub.f32 %v671, %v681
    %v719 = vsub.f32 %v672, %v685
    %v721 = vlaneseq
    %v722 = vshrl.u32 %v721, 7
    %v723 = vsub.s32 0, %v722
    %v724 = vrot.slane %v674, %v723
    %v725 = vlaneseq
    %v726 = vshrl.u32 %v725, 7
    %v727 = vsub.s32 1, %v726
    %v728 = vrot.slane %v674, %v727
    %v731 = vmul.f32 %v688, %v724
    %v732 = vmul.f32 %v689, %v728
    %v733 = vmul.f32 %v690, %v724
    %v734 = vmul.f32 %v691, %v728
    %v735 = vmul.f32 %v692, %v724
    %v736 = vmul.f32 %v693, %v728
    %v737 = vmul.f32 %v694, %v724
    %v738 = vmul.f32 %v695, %v728
    %v739 = vmul.f32 %v696, %v724
    %v740 = vmul.f32 %v697, %v728
    %v741 = vmul.f32 %v698, %v724
    %v742 = vmul.f32 %v699, %v728
    %v743 = vmul.f32 %v700, %v724
    %v744 = vmul.f32 %v701, %v728
    %v745 = vmul.f32 %v702, %v724
    %v746 = vmul.f32 %v703, %v728
    %v747 = vmul.f32 %v704, %v724
    %v748 = vmul.f32 %v705, %v728
    %v749 = vmul.f32 %v706, %v724
    %v750 = vmul.f32 %v707, %v728
    %v751 = vmul.f32 %v708, %v724
    %v752 = vmul.f32 %v709, %v728
    %v753 = vmul.f32 %v710, %v724
    %v754 = vmul.f32 %v711, %v728
    %v755 = vmul.f32 %v712, %v724
    %v756 = vmul.f32 %v713, %v728
    %v757 = vmul.f32 %v714, %v724
    %v758 = vmul.f32 %v715, %v728
    %v759 = vmul.f32 %v716, %v724
    %v760 = vmul.f32 %v717, %v728
    %v761 = vmul.f32 %v718, %v724
    %v762 = vmul.f32 %v719, %v728
    %v763 = vld [vmem:[#allocation2 + $0x8] sm:$0xf]
    %v764 = vld [vmem:[#allocation2 + $0x28] sm:$0xf]
    %v765 = vpack.c.bf16 %v733, %v731
    %v766 = vpack.c.bf16 %v734, %v732
    %v767 = vpack.c.bf16 %v737, %v735
    %v768 = vpack.c.bf16 %v738, %v736
    %v769 = vpack.c.bf16 %v741, %v739
    %v770 = vpack.c.bf16 %v742, %v740
    %v771 = vpack.c.bf16 %v745, %v743
    %v772 = vpack.c.bf16 %v746, %v744
    %v773 = vpack.c.bf16 %v749, %v747
    %v774 = vpack.c.bf16 %v750, %v748
    %v775 = vpack.c.bf16 %v753, %v751
    %v776 = vpack.c.bf16 %v754, %v752
    %v777 = vpack.c.bf16 %v757, %v755
    %v778 = vpack.c.bf16 %v758, %v756
    %v779 = vpack.c.bf16 %v761, %v759
    %v780 = vpack.c.bf16 %v762, %v760
    %v783 = vunpack.c.l.b16 %v763
    %v784 = vunpack.c.l.b16 %v764
    %v785 = vpack.c.b16 %v784, %v783
    %787 = vmatprep.subr.bf16.mxu0 %v766
    %788 = vmatpush1.bf16.msra.mxu0 %v765
    %789 = vmatprep.subr.bf16.mxu0 %v768
    %790 = vmatpush1.bf16.msra.mxu0 %v767
    %791 = vmatprep.subr.bf16.mxu0 %v770
    %792 = vmatpush1.bf16.msra.mxu0 %v769
    %793 = vmatprep.subr.bf16.mxu0 %v772
    %794 = vmatpush1.bf16.msra.mxu0 %v771
    %795 = vmatprep.subr.bf16.mxu0 %v774
    %796 = vmatpush1.bf16.msra.mxu0 %v773
    %797 = vmatprep.subr.bf16.mxu0 %v776
    %798 = vmatpush1.bf16.msra.mxu0 %v775
    %799 = vmatprep.subr.bf16.mxu0 %v778
    %800 = vmatpush1.bf16.msra.mxu0 %v777
    %801 = vmatprep.subr.bf16.mxu0 %v780
    %802 = vmatpush1.bf16.msra.mxu0 %v779
    %803 = vmatprep.subr.bf16.mxu0 0
    %804 = vmatpush1.bf16.msra.mxu0 0
    %805 = vmatprep.subr.bf16.mxu0 0
    %806 = vmatpush1.bf16.msra.mxu0 0
    %807 = vmatprep.subr.bf16.mxu0 0
    %808 = vmatpush1.bf16.msra.mxu0 0
    %809 = vmatprep.subr.bf16.mxu0 0
    %810 = vmatpush1.bf16.msra.mxu0 0
    %811 = vmatprep.subr.bf16.mxu0 0
    %812 = vmatpush1.bf16.msra.mxu0 0
    %813 = vmatprep.subr.bf16.mxu0 0
    %814 = vmatpush1.bf16.msra.mxu0 0
    %815 = vmatprep.subr.bf16.mxu0 0
    %816 = vmatpush1.bf16.msra.mxu0 0
    %817 = vmatprep.subr.bf16.mxu0 0
    %818 = vmatpush1.bf16.msra.mxu0 0
    %819 = vmatprep.mubr.bf16.mxu0 0
    %820 = vmatmul.mubr.bf16.gmra.mrb[0].mxu0 %v785
    %v821 = vpop.f32.mrb[0].mxu0
    %v822 = vadd.f32 0.0, %v821
    %v823 = vpop.f32.mrb[0].mxu0
    %v824 = vadd.f32 0.0, %v823
    %v825 = vpop.f32.mrb[0].mxu0
    %v826 = vadd.f32 0.0, %v825
    %v827 = vpop.f32.mrb[0].mxu0
    %v828 = vadd.f32 0.0, %v827
    %829 = vdwg.mxu0
    %v830 = vadd.f32 %v569, %v822
    %v831 = vadd.f32 %v571, %v824
    %v832 = vadd.f32 %v573, %v826
    %v833 = vadd.f32 %v575, %v828
    %v834 = vshra.s32 %v73, 12
    %v835 = vshra.s32 %v74, 12
    %v836 = vshra.s32 %v75, 12
    %v837 = vshra.s32 %v76, 12
    %v838 = vshra.s32 %v77, 12
    %v839 = vshra.s32 %v78, 12
    %v840 = vshra.s32 %v79, 12
    %v841 = vshra.s32 %v80, 12
    %v842 = vshra.s32 %v81, 12
    %v843 = vshra.s32 %v82, 12
    %v844 = vshra.s32 %v83, 12
    %v845 = vshra.s32 %v84, 12
    %v846 = vshra.s32 %v85, 12
    %v847 = vshra.s32 %v86, 12
    %v848 = vshra.s32 %v87, 12
    %v849 = vshra.s32 %v88, 12
    %v850 = vshra.s32 %v89, 12
    %v851 = vshra.s32 %v90, 12
    %v852 = vshra.s32 %v91, 12
    %v853 = vshra.s32 %v92, 12
    %v854 = vshra.s32 %v93, 12
    %v855 = vshra.s32 %v94, 12
    %v856 = vshra.s32 %v95, 12
    %v857 = vshra.s32 %v96, 12
    %v858 = vshra.s32 %v97, 12
    %v859 = vshra.s32 %v98, 12
    %v860 = vshra.s32 %v99, 12
    %v861 = vshra.s32 %v100, 12
    %v862 = vshra.s32 %v101, 12
    %v863 = vshra.s32 %v102, 12
    %v864 = vshra.s32 %v103, 12
    %v865 = vshra.s32 %v104, 12
    %v866 = vand.u32 %v834, 15
    %v867 = vand.u32 %v835, 15
    %v868 = vand.u32 %v836, 15
    %v869 = vand.u32 %v837, 15
    %v870 = vand.u32 %v838, 15
    %v871 = vand.u32 %v839, 15
    %v872 = vand.u32 %v840, 15
    %v873 = vand.u32 %v841, 15
    %v874 = vand.u32 %v842, 15
    %v875 = vand.u32 %v843, 15
    %v876 = vand.u32 %v844, 15
    %v877 = vand.u32 %v845, 15
    %v878 = vand.u32 %v846, 15
    %v879 = vand.u32 %v847, 15
    %v880 = vand.u32 %v848, 15
    %v881 = vand.u32 %v849, 15
    %v882 = vand.u32 %v850, 15
    %v883 = vand.u32 %v851, 15
    %v884 = vand.u32 %v852, 15
    %v885 = vand.u32 %v853, 15
    %v886 = vand.u32 %v854, 15
    %v887 = vand.u32 %v855, 15
    %v888 = vand.u32 %v856, 15
    %v889 = vand.u32 %v857, 15
    %v890 = vand.u32 %v858, 15
    %v891 = vand.u32 %v859, 15
    %v892 = vand.u32 %v860, 15
    %v893 = vand.u32 %v861, 15
    %v894 = vand.u32 %v862, 15
    %v895 = vand.u32 %v863, 15
    %v896 = vand.u32 %v864, 15
    %v897 = vand.u32 %v865, 15
    %v898 = vcvt.s32.f32 %v866
    %v899 = vcvt.s32.f32 %v867
    %v900 = vcvt.s32.f32 %v868
    %v901 = vcvt.s32.f32 %v869
    %v902 = vcvt.s32.f32 %v870
    %v903 = vcvt.s32.f32 %v871
    %v904 = vcvt.s32.f32 %v872
    %v905 = vcvt.s32.f32 %v873
    %v906 = vcvt.s32.f32 %v874
    %v907 = vcvt.s32.f32 %v875
    %v908 = vcvt.s32.f32 %v876
    %v909 = vcvt.s32.f32 %v877
    %v910 = vcvt.s32.f32 %v878
    %v911 = vcvt.s32.f32 %v879
    %v912 = vcvt.s32.f32 %v880
    %v913 = vcvt.s32.f32 %v881
    %v914 = vcvt.s32.f32 %v882
    %v915 = vcvt.s32.f32 %v883
    %v916 = vcvt.s32.f32 %v884
    %v917 = vcvt.s32.f32 %v885
    %v918 = vcvt.s32.f32 %v886
    %v919 = vcvt.s32.f32 %v887
    %v920 = vcvt.s32.f32 %v888
    %v921 = vcvt.s32.f32 %v889
    %v922 = vcvt.s32.f32 %v890
    %v923 = vcvt.s32.f32 %v891
    %v924 = vcvt.s32.f32 %v892
    %v925 = vcvt.s32.f32 %v893
    %v926 = vcvt.s32.f32 %v894
    %v927 = vcvt.s32.f32 %v895
    %v928 = vcvt.s32.f32 %v896
    %v929 = vcvt.s32.f32 %v897
    %s930 = scalar_lea.vmem [#allocation7], 3
    %v931 = vld [vmem:[%s930] ss:$8 sm:$0x3]
    %s932 = scalar_lea.vmem [#allocation8], 3
    %v933 = vld [vmem:[%s932] ss:$8 sm:$0x3]
    %v935 = vlaneseq
    %v936 = vshrl.u32 %v935, 7
    %v937 = vsub.s32 0, %v936
    %v938 = vrot.slane %v933, %v937
    %v939 = vlaneseq
    %v940 = vshrl.u32 %v939, 7
    %v941 = vsub.s32 1, %v940
    %v942 = vrot.slane %v933, %v941
    %v945 = vsub.f32 %v898, %v938
    %v946 = vsub.f32 %v899, %v942
    %v947 = vsub.f32 %v900, %v938
    %v948 = vsub.f32 %v901, %v942
    %v949 = vsub.f32 %v902, %v938
    %v950 = vsub.f32 %v903, %v942
    %v951 = vsub.f32 %v904, %v938
    %v952 = vsub.f32 %v905, %v942
    %v953 = vsub.f32 %v906, %v938
    %v954 = vsub.f32 %v907, %v942
    %v955 = vsub.f32 %v908, %v938
    %v956 = vsub.f32 %v909, %v942
    %v957 = vsub.f32 %v910, %v938
    %v958 = vsub.f32 %v911, %v942
    %v959 = vsub.f32 %v912, %v938
    %v960 = vsub.f32 %v913, %v942
    %v961 = vsub.f32 %v914, %v938
    %v962 = vsub.f32 %v915, %v942
    %v963 = vsub.f32 %v916, %v938
    %v964 = vsub.f32 %v917, %v942
    %v965 = vsub.f32 %v918, %v938
    %v966 = vsub.f32 %v919, %v942
    %v967 = vsub.f32 %v920, %v938
    %v968 = vsub.f32 %v921, %v942
    %v969 = vsub.f32 %v922, %v938
    %v970 = vsub.f32 %v923, %v942
    %v971 = vsub.f32 %v924, %v938
    %v972 = vsub.f32 %v925, %v942
    %v973 = vsub.f32 %v926, %v938
    %v974 = vsub.f32 %v927, %v942
    %v975 = vsub.f32 %v928, %v938
    %v976 = vsub.f32 %v929, %v942
    %v978 = vlaneseq
    %v979 = vshrl.u32 %v978, 7
    %v980 = vsub.s32 0, %v979
    %v981 = vrot.slane %v931, %v980
    %v982 = vlaneseq
    %v983 = vshrl.u32 %v982, 7
    %v984 = vsub.s32 1, %v983
    %v985 = vrot.slane %v931, %v984
    %v988 = vmul.f32 %v945, %v981
    %v989 = vmul.f32 %v946, %v985
    %v990 = vmul.f32 %v947, %v981
    %v991 = vmul.f32 %v948, %v985
    %v992 = vmul.f32 %v949, %v981
    %v993 = vmul.f32 %v950, %v985
    %v994 = vmul.f32 %v951, %v981
    %v995 = vmul.f32 %v952, %v985
    %v996 = vmul.f32 %v953, %v981
    %v997 = vmul.f32 %v954, %v985
    %v998 = vmul.f32 %v955, %v981
    %v999 = vmul.f32 %v956, %v985
    %v1000 = vmul.f32 %v957, %v981
    %v1001 = vmul.f32 %v958, %v985
    %v1002 = vmul.f32 %v959, %v981
    %v1003 = vmul.f32 %v960, %v985
    %v1004 = vmul.f32 %v961, %v981
    %v1005 = vmul.f32 %v962, %v985
    %v1006 = vmul.f32 %v963, %v981
    %v1007 = vmul.f32 %v964, %v985
    %v1008 = vmul.f32 %v965, %v981
    %v1009 = vmul.f32 %v966, %v985
    %v1010 = vmul.f32 %v967, %v981
    %v1011 = vmul.f32 %v968, %v985
    %v1012 = vmul.f32 %v969, %v981
    %v1013 = vmul.f32 %v970, %v985
    %v1014 = vmul.f32 %v971, %v981
    %v1015 = vmul.f32 %v972, %v985
    %v1016 = vmul.f32 %v973, %v981
    %v1017 = vmul.f32 %v974, %v985
    %v1018 = vmul.f32 %v975, %v981
    %v1019 = vmul.f32 %v976, %v985
    %v1020 = vld [vmem:[#allocation2 + $0xc] sm:$0xf]
    %v1021 = vld [vmem:[#allocation2 + $0x2c] sm:$0xf]
    %v1022 = vpack.c.bf16 %v990, %v988
    %v1023 = vpack.c.bf16 %v991, %v989
    %v1024 = vpack.c.bf16 %v994, %v992
    %v1025 = vpack.c.bf16 %v995, %v993
    %v1026 = vpack.c.bf16 %v998, %v996
    %v1027 = vpack.c.bf16 %v999, %v997
    %v1028 = vpack.c.bf16 %v1002, %v1000
    %v1029 = vpack.c.bf16 %v1003, %v1001
    %v1030 = vpack.c.bf16 %v1006, %v1004
    %v1031 = vpack.c.bf16 %v1007, %v1005
    %v1032 = vpack.c.bf16 %v1010, %v1008
    %v1033 = vpack.c.bf16 %v1011, %v1009
    %v1034 = vpack.c.bf16 %v1014, %v1012
    %v1035 = vpack.c.bf16 %v1015, %v1013
    %v1036 = vpack.c.bf16 %v1018, %v1016
    %v1037 = vpack.c.bf16 %v1019, %v1017
    %v1040 = vunpack.c.l.b16 %v1020
    %v1041 = vunpack.c.l.b16 %v1021
    %v1042 = vpack.c.b16 %v1041, %v1040
    %1044 = vmatprep.subr.bf16.mxu0 %v1023
    %1045 = vmatpush1.bf16.msra.mxu0 %v1022
    %1046 = vmatprep.subr.bf16.mxu0 %v1025
    %1047 = vmatpush1.bf16.msra.mxu0 %v1024
    %1048 = vmatprep.subr.bf16.mxu0 %v1027
    %1049 = vmatpush1.bf16.msra.mxu0 %v1026
    %1050 = vmatprep.subr.bf16.mxu0 %v1029
    %1051 = vmatpush1.bf16.msra.mxu0 %v1028
    %1052 = vmatprep.subr.bf16.mxu0 %v1031
    %1053 = vmatpush1.bf16.msra.mxu0 %v1030
    %1054 = vmatprep.subr.bf16.mxu0 %v1033
    %1055 = vmatpush1.bf16.msra.mxu0 %v1032
    %1056 = vmatprep.subr.bf16.mxu0 %v1035
    %1057 = vmatpush1.bf16.msra.mxu0 %v1034
    %1058 = vmatprep.subr.bf16.mxu0 %v1037
    %1059 = vmatpush1.bf16.msra.mxu0 %v1036
    %1060 = vmatprep.subr.bf16.mxu0 0
    %1061 = vmatpush1.bf16.msra.mxu0 0
    %1062 = vmatprep.subr.bf16.mxu0 0
    %1063 = vmatpush1.bf16.msra.mxu0 0
    %1064 = vmatprep.subr.bf16.mxu0 0
    %1065 = vmatpush1.bf16.msra.mxu0 0
    %1066 = vmatprep.subr.bf16.mxu0 0
    %1067 = vmatpush1.bf16.msra.mxu0 0
    %1068 = vmatprep.subr.bf16.mxu0 0
    %1069 = vmatpush1.bf16.msra.mxu0 0
    %1070 = vmatprep.subr.bf16.mxu0 0
    %1071 = vmatpush1.bf16.msra.mxu0 0
    %1072 = vmatprep.subr.bf16.mxu0 0
    %1073 = vmatpush1.bf16.msra.mxu0 0
    %1074 = vmatprep.subr.bf16.mxu0 0
    %1075 = vmatpush1.bf16.msra.mxu0 0
    %1076 = vmatprep.mubr.bf16.mxu0 0
    %1077 = vmatmul.mubr.bf16.gmra.mrb[0].mxu0 %v1042
    %v1078 = vpop.f32.mrb[0].mxu0
    %v1079 = vadd.f32 0.0, %v1078
    %v1080 = vpop.f32.mrb[0].mxu0
    %v1081 = vadd.f32 0.0, %v1080
    %v1082 = vpop.f32.mrb[0].mxu0
    %v1083 = vadd.f32 0.0, %v1082
    %v1084 = vpop.f32.mrb[0].mxu0
    %v1085 = vadd.f32 0.0, %v1084
    %1086 = vdwg.mxu0
    %v1087 = vadd.f32 %v830, %v1079
    %v1088 = vadd.f32 %v831, %v1081
    %v1089 = vadd.f32 %v832, %v1083
    %v1090 = vadd.f32 %v833, %v1085
    %v1091 = vshra.s32 %v73, 16
    %v1092 = vshra.s32 %v74, 16
    %v1093 = vshra.s32 %v75, 16
    %v1094 = vshra.s32 %v76, 16
    %v1095 = vshra.s32 %v77, 16
    %v1096 = vshra.s32 %v78, 16
    %v1097 = vshra.s32 %v79, 16
    %v1098 = vshra.s32 %v80, 16
    %v1099 = vshra.s32 %v81, 16
    %v1100 = vshra.s32 %v82, 16
    %v1101 = vshra.s32 %v83, 16
    %v1102 = vshra.s32 %v84, 16
    %v1103 = vshra.s32 %v85, 16
    %v1104 = vshra.s32 %v86, 16
    %v1105 = vshra.s32 %v87, 16
    %v1106 = vshra.s32 %v88, 16
    %v1107 = vshra.s32 %v89, 16
    %v1108 = vshra.s32 %v90, 16
    %v1109 = vshra.s32 %v91, 16
    %v1110 = vshra.s32 %v92, 16
    %v1111 = vshra.s32 %v93, 16
    %v1112 = vshra.s32 %v94, 16
    %v1113 = vshra.s32 %v95, 16
    %v1114 = vshra.s32 %v96, 16
    %v1115 = vshra.s32 %v97, 16
    %v1116 = vshra.s32 %v98, 16
    %v1117 = vshra.s32 %v99, 16
    %v1118 = vshra.s32 %v100, 16
    %v1119 = vshra.s32 %v101, 16
    %v1120 = vshra.s32 %v102, 16
    %v1121 = vshra.s32 %v103, 16
    %v1122 = vshra.s32 %v104, 16
    %v1123 = vand.u32 %v1091, 15
    %v1124 = vand.u32 %v1092, 15
    %v1125 = vand.u32 %v1093, 15
    %v1126 = vand.u32 %v1094, 15
    %v1127 = vand.u32 %v1095, 15
    %v1128 = vand.u32 %v1096, 15
    %v1129 = vand.u32 %v1097, 15
    %v1130 = vand.u32 %v1098, 15
    %v1131 = vand.u32 %v1099, 15
    %v1132 = vand.u32 %v1100, 15
    %v1133 = vand.u32 %v1101, 15
    %v1134 = vand.u32 %v1102, 15
    %v1135 = vand.u32 %v1103, 15
    %v1136 = vand.u32 %v1104, 15
    %v1137 = vand.u32 %v1105, 15
    %v1138 = vand.u32 %v1106, 15
    %v1139 = vand.u32 %v1107, 15
    %v1140 = vand.u32 %v1108, 15
    %v1141 = vand.u32 %v1109, 15
    %v1142 = vand.u32 %v1110, 15
    %v1143 = vand.u32 %v1111, 15
    %v1144 = vand.u32 %v1112, 15
    %v1145 = vand.u32 %v1113, 15
    %v1146 = vand.u32 %v1114, 15
    %v1147 = vand.u32 %v1115, 15
    %v1148 = vand.u32 %v1116, 15
    %v1149 = vand.u32 %v1117, 15
    %v1150 = vand.u32 %v1118, 15
    %v1151 = vand.u32 %v1119, 15
    %v1152 = vand.u32 %v1120, 15
    %v1153 = vand.u32 %v1121, 15
    %v1154 = vand.u32 %v1122, 15
    %v1155 = vcvt.s32.f32 %v1123
    %v1156 = vcvt.s32.f32 %v1124
    %v1157 = vcvt.s32.f32 %v1125
    %v1158 = vcvt.s32.f32 %v1126
    %v1159 = vcvt.s32.f32 %v1127
    %v1160 = vcvt.s32.f32 %v1128
    %v1161 = vcvt.s32.f32 %v1129
    %v1162 = vcvt.s32.f32 %v1130
    %v1163 = vcvt.s32.f32 %v1131
    %v1164 = vcvt.s32.f32 %v1132
    %v1165 = vcvt.s32.f32 %v1133
    %v1166 = vcvt.s32.f32 %v1134
    %v1167 = vcvt.s32.f32 %v1135
    %v1168 = vcvt.s32.f32 %v1136
    %v1169 = vcvt.s32.f32 %v1137
    %v1170 = vcvt.s32.f32 %v1138
    %v1171 = vcvt.s32.f32 %v1139
    %v1172 = vcvt.s32.f32 %v1140
    %v1173 = vcvt.s32.f32 %v1141
    %v1174 = vcvt.s32.f32 %v1142
    %v1175 = vcvt.s32.f32 %v1143
    %v1176 = vcvt.s32.f32 %v1144
    %v1177 = vcvt.s32.f32 %v1145
    %v1178 = vcvt.s32.f32 %v1146
    %v1179 = vcvt.s32.f32 %v1147
    %v1180 = vcvt.s32.f32 %v1148
    %v1181 = vcvt.s32.f32 %v1149
    %v1182 = vcvt.s32.f32 %v1150
    %v1183 = vcvt.s32.f32 %v1151
    %v1184 = vcvt.s32.f32 %v1152
    %v1185 = vcvt.s32.f32 %v1153
    %v1186 = vcvt.s32.f32 %v1154
    %s1187 = scalar_lea.vmem [#allocation7], 4
    %v1188 = vld [vmem:[%s1187] ss:$8 sm:$0x3]
    %s1189 = scalar_lea.vmem [#allocation8], 4
    %v1190 = vld [vmem:[%s1189] ss:$8 sm:$0x3]
    %v1192 = vlaneseq
    %v1193 = vshrl.u32 %v1192, 7
    %v1194 = vsub.s32 0, %v1193
    %v1195 = vrot.slane %v1190, %v1194
    %v1196 = vlaneseq
    %v1197 = vshrl.u32 %v1196, 7
    %v1198 = vsub.s32 1, %v1197
    %v1199 = vrot.slane %v1190, %v1198
    %v1202 = vsub.f32 %v1155, %v1195
    %v1203 = vsub.f32 %v1156, %v1199
    %v1204 = vsub.f32 %v1157, %v1195
    %v1205 = vsub.f32 %v1158, %v1199
    %v1206 = vsub.f32 %v1159, %v1195
    %v1207 = vsub.f32 %v1160, %v1199
    %v1208 = vsub.f32 %v1161, %v1195
    %v1209 = vsub.f32 %v1162, %v1199
    %v1210 = vsub.f32 %v1163, %v1195
    %v1211 = vsub.f32 %v1164, %v1199
    %v1212 = vsub.f32 %v1165, %v1195
    %v1213 = vsub.f32 %v1166, %v1199
    %v1214 = vsub.f32 %v1167, %v1195
    %v1215 = vsub.f32 %v1168, %v1199
    %v1216 = vsub.f32 %v1169, %v1195
    %v1217 = vsub.f32 %v1170, %v1199
    %v1218 = vsub.f32 %v1171, %v1195
    %v1219 = vsub.f32 %v1172, %v1199
    %v1220 = vsub.f32 %v1173, %v1195
    %v1221 = vsub.f32 %v1174, %v1199
    %v1222 = vsub.f32 %v1175, %v1195
    %v1223 = vsub.f32 %v1176, %v1199
    %v1224 = vsub.f32 %v1177, %v1195
    %v1225 = vsub.f32 %v1178, %v1199
    %v1226 = vsub.f32 %v1179, %v1195
    %v1227 = vsub.f32 %v1180, %v1199
    %v1228 = vsub.f32 %v1181, %v1195
    %v1229 = vsub.f32 %v1182, %v1199
    %v1230 = vsub.f32 %v1183, %v1195
    %v1231 = vsub.f32 %v1184, %v1199
    %v1232 = vsub.f32 %v1185, %v1195
    %v1233 = vsub.f32 %v1186, %v1199
    %v1235 = vlaneseq
    %v1236 = vshrl.u32 %v1235, 7
    %v1237 = vsub.s32 0, %v1236
    %v1238 = vrot.slane %v1188, %v1237
    %v1239 = vlaneseq
    %v1240 = vshrl.u32 %v1239, 7
    %v1241 = vsub.s32 1, %v1240
    %v1242 = vrot.slane %v1188, %v1241
    %v1245 = vmul.f32 %v1202, %v1238
    %v1246 = vmul.f32 %v1203, %v1242
    %v1247 = vmul.f32 %v1204, %v1238
    %v1248 = vmul.f32 %v1205, %v1242
    %v1249 = vmul.f32 %v1206, %v1238
    %v1250 = vmul.f32 %v1207, %v1242
    %v1251 = vmul.f32 %v1208, %v1238
    %v1252 = vmul.f32 %v1209, %v1242
    %v1253 = vmul.f32 %v1210, %v1238
    %v1254 = vmul.f32 %v1211, %v1242
    %v1255 = vmul.f32 %v1212, %v1238
    %v1256 = vmul.f32 %v1213, %v1242
    %v1257 = vmul.f32 %v1214, %v1238
    %v1258 = vmul.f32 %v1215, %v1242
    %v1259 = vmul.f32 %v1216, %v1238
    %v1260 = vmul.f32 %v1217, %v1242
    %v1261 = vmul.f32 %v1218, %v1238
    %v1262 = vmul.f32 %v1219, %v1242
    %v1263 = vmul.f32 %v1220, %v1238
    %v1264 = vmul.f32 %v1221, %v1242
    %v1265 = vmul.f32 %v1222, %v1238
    %v1266 = vmul.f32 %v1223, %v1242
    %v1267 = vmul.f32 %v1224, %v1238
    %v1268 = vmul.f32 %v1225, %v1242
    %v1269 = vmul.f32 %v1226, %v1238
    %v1270 = vmul.f32 %v1227, %v1242
    %v1271 = vmul.f32 %v1228, %v1238
    %v1272 = vmul.f32 %v1229, %v1242
    %v1273 = vmul.f32 %v1230, %v1238
    %v1274 = vmul.f32 %v1231, %v1242
    %v1275 = vmul.f32 %v1232, %v1238
    %v1276 = vmul.f32 %v1233, %v1242
    %v1277 = vld [vmem:[#allocation2 + $0x10] sm:$0xf]
    %v1278 = vld [vmem:[#allocation2 + $0x30] sm:$0xf]
    %v1279 = vpack.c.bf16 %v1247, %v1245
    %v1280 = vpack.c.bf16 %v1248, %v1246
    %v1281 = vpack.c.bf16 %v1251, %v1249
    %v1282 = vpack.c.bf16 %v1252, %v1250
    %v1283 = vpack.c.bf16 %v1255, %v1253
    %v1284 = vpack.c.bf16 %v1256, %v1254
    %v1285 = vpack.c.bf16 %v1259, %v1257
    %v1286 = vpack.c.bf16 %v1260, %v1258
    %v1287 = vpack.c.bf16 %v1263, %v1261
    %v1288 = vpack.c.bf16 %v1264, %v1262
    %v1289 = vpack.c.bf16 %v1267, %v1265
    %v1290 = vpack.c.bf16 %v1268, %v1266
    %v1291 = vpack.c.bf16 %v1271, %v1269
    %v1292 = vpack.c.bf16 %v1272, %v1270
    %v1293 = vpack.c.bf16 %v1275, %v1273
    %v1294 = vpack.c.bf16 %v1276, %v1274
    %v1297 = vunpack.c.l.b16 %v1277
    %v1298 = vunpack.c.l.b16 %v1278
    %v1299 = vpack.c.b16 %v1298, %v1297
    %1301 = vmatprep.subr.bf16.mxu0 %v1280
    %1302 = vmatpush1.bf16.msra.mxu0 %v1279
    %1303 = vmatprep.subr.bf16.mxu0 %v1282
    %1304 = vmatpush1.bf16.msra.mxu0 %v1281
    %1305 = vmatprep.subr.bf16.mxu0 %v1284
    %1306 = vmatpush1.bf16.msra.mxu0 %v1283
    %1307 = vmatprep.subr.bf16.mxu0 %v1286
    %1308 = vmatpush1.bf16.msra.mxu0 %v1285
    %1309 = vmatprep.subr.bf16.mxu0 %v1288
    %1310 = vmatpush1.bf16.msra.mxu0 %v1287
    %1311 = vmatprep.subr.bf16.mxu0 %v1290
    %1312 = vmatpush1.bf16.msra.mxu0 %v1289
    %1313 = vmatprep.subr.bf16.mxu0 %v1292
    %1314 = vmatpush1.bf16.msra.mxu0 %v1291
    %1315 = vmatprep.subr.bf16.mxu0 %v1294
    %1316 = vmatpush1.bf16.msra.mxu0 %v1293
    %1317 = vmatprep.subr.bf16.mxu0 0
    %1318 = vmatpush1.bf16.msra.mxu0 0
    %1319 = vmatprep.subr.bf16.mxu0 0
    %1320 = vmatpush1.bf16.msra.mxu0 0
    %1321 = vmatprep.subr.bf16.mxu0 0
    %1322 = vmatpush1.bf16.msra.mxu0 0
    %1323 = vmatprep.subr.bf16.mxu0 0
    %1324 = vmatpush1.bf16.msra.mxu0 0
    %1325 = vmatprep.subr.bf16.mxu0 0
    %1326 = vmatpush1.bf16.msra.mxu0 0
    %1327 = vmatprep.subr.bf16.mxu0 0
    %1328 = vmatpush1.bf16.msra.mxu0 0
    %1329 = vmatprep.subr.bf16.mxu0 0
    %1330 = vmatpush1.bf16.msra.mxu0 0
    %1331 = vmatprep.subr.bf16.mxu0 0
    %1332 = vmatpush1.bf16.msra.mxu0 0
    %1333 = vmatprep.mubr.bf16.mxu0 0
    %1334 = vmatmul.mubr.bf16.gmra.mrb[0].mxu0 %v1299
    %v1335 = vpop.f32.mrb[0].mxu0
    %v1336 = vadd.f32 0.0, %v1335
    %v1337 = vpop.f32.mrb[0].mxu0
    %v1338 = vadd.f32 0.0, %v1337
    %v1339 = vpop.f32.mrb[0].mxu0
    %v1340 = vadd.f32 0.0, %v1339
    %v1341 = vpop.f32.mrb[0].mxu0
    %v1342 = vadd.f32 0.0, %v1341
    %1343 = vdwg.mxu0
    %v1344 = vadd.f32 %v1087, %v1336
    %v1345 = vadd.f32 %v1088, %v1338
    %v1346 = vadd.f32 %v1089, %v1340
    %v1347 = vadd.f32 %v1090, %v1342
    %v1348 = vshra.s32 %v73, 20
    %v1349 = vshra.s32 %v74, 20
    %v1350 = vshra.s32 %v75, 20
    %v1351 = vshra.s32 %v76, 20
    %v1352 = vshra.s32 %v77, 20
    %v1353 = vshra.s32 %v78, 20
    %v1354 = vshra.s32 %v79, 20
    %v1355 = vshra.s32 %v80, 20
    %v1356 = vshra.s32 %v81, 20
    %v1357 = vshra.s32 %v82, 20
    %v1358 = vshra.s32 %v83, 20
    %v1359 = vshra.s32 %v84, 20
    %v1360 = vshra.s32 %v85, 20
    %v1361 = vshra.s32 %v86, 20
    %v1362 = vshra.s32 %v87, 20
    %v1363 = vshra.s32 %v88, 20
    %v1364 = vshra.s32 %v89, 20
    %v1365 = vshra.s32 %v90, 20
    %v1366 = vshra.s32 %v91, 20
    %v1367 = vshra.s32 %v92, 20
    %v1368 = vshra.s32 %v93, 20
    %v1369 = vshra.s32 %v94, 20
    %v1370 = vshra.s32 %v95, 20
    %v1371 = vshra.s32 %v96, 20
    %v1372 = vshra.s32 %v97, 20
    %v1373 = vshra.s32 %v98, 20
    %v1374 = vshra.s32 %v99, 20
    %v1375 = vshra.s32 %v100, 20
    %v1376 = vshra.s32 %v101, 20
    %v1377 = vshra.s32 %v102, 20
    %v1378 = vshra.s32 %v103, 20
    %v1379 = vshra.s32 %v104, 20
    %v1380 = vand.u32 %v1348, 15
    %v1381 = vand.u32 %v1349, 15
    %v1382 = vand.u32 %v1350, 15
    %v1383 = vand.u32 %v1351, 15
    %v1384 = vand.u32 %v1352, 15
    %v1385 = vand.u32 %v1353, 15
    %v1386 = vand.u32 %v1354, 15
    %v1387 = vand.u32 %v1355, 15
    %v1388 = vand.u32 %v1356, 15
    %v1389 = vand.u32 %v1357, 15
    %v1390 = vand.u32 %v1358, 15
    %v1391 = vand.u32 %v1359, 15
    %v1392 = vand.u32 %v1360, 15
    %v1393 = vand.u32 %v1361, 15
    %v1394 = vand.u32 %v1362, 15
    %v1395 = vand.u32 %v1363, 15
    %v1396 = vand.u32 %v1364, 15
    %v1397 = vand.u32 %v1365, 15
    %v1398 = vand.u32 %v1366, 15
    %v1399 = vand.u32 %v1367, 15
    %v1400 = vand.u32 %v1368, 15
    %v1401 = vand.u32 %v1369, 15
    %v1402 = vand.u32 %v1370, 15
    %v1403 = vand.u32 %v1371, 15
    %v1404 = vand.u32 %v1372, 15
    %v1405 = vand.u32 %v1373, 15
    %v1406 = vand.u32 %v1374, 15
    %v1407 = vand.u32 %v1375, 15
    %v1408 = vand.u32 %v1376, 15
    %v1409 = vand.u32 %v1377, 15
    %v1410 = vand.u32 %v1378, 15
    %v1411 = vand.u32 %v1379, 15
    %v1412 = vcvt.s32.f32 %v1380
    %v1413 = vcvt.s32.f32 %v1381
    %v1414 = vcvt.s32.f32 %v1382
    %v1415 = vcvt.s32.f32 %v1383
    %v1416 = vcvt.s32.f32 %v1384
    %v1417 = vcvt.s32.f32 %v1385
    %v1418 = vcvt.s32.f32 %v1386
    %v1419 = vcvt.s32.f32 %v1387
    %v1420 = vcvt.s32.f32 %v1388
    %v1421 = vcvt.s32.f32 %v1389
    %v1422 = vcvt.s32.f32 %v1390
    %v1423 = vcvt.s32.f32 %v1391
    %v1424 = vcvt.s32.f32 %v1392
    %v1425 = vcvt.s32.f32 %v1393
    %v1426 = vcvt.s32.f32 %v1394
    %v1427 = vcvt.s32.f32 %v1395
    %v1428 = vcvt.s32.f32 %v1396
    %v1429 = vcvt.s32.f32 %v1397
    %v1430 = vcvt.s32.f32 %v1398
    %v1431 = vcvt.s32.f32 %v1399
    %v1432 = vcvt.s32.f32 %v1400
    %v1433 = vcvt.s32.f32 %v1401
    %v1434 = vcvt.s32.f32 %v1402
    %v1435 = vcvt.s32.f32 %v1403
    %v1436 = vcvt.s32.f32 %v1404
    %v1437 = vcvt.s32.f32 %v1405
    %v1438 = vcvt.s32.f32 %v1406
    %v1439 = vcvt.s32.f32 %v1407
    %v1440 = vcvt.s32.f32 %v1408
    %v1441 = vcvt.s32.f32 %v1409
    %v1442 = vcvt.s32.f32 %v1410
    %v1443 = vcvt.s32.f32 %v1411
    %s1444 = scalar_lea.vmem [#allocation7], 5
    %v1445 = vld [vmem:[%s1444] ss:$8 sm:$0x3]
    %s1446 = scalar_lea.vmem [#allocation8], 5
    %v1447 = vld [vmem:[%s1446] ss:$8 sm:$0x3]
    %v1449 = vlaneseq
    %v1450 = vshrl.u32 %v1449, 7
    %v1451 = vsub.s32 0, %v1450
    %v1452 = vrot.slane %v1447, %v1451
    %v1453 = vlaneseq
    %v1454 = vshrl.u32 %v1453, 7
    %v1455 = vsub.s32 1, %v1454
    %v1456 = vrot.slane %v1447, %v1455
    %v1459 = vsub.f32 %v1412, %v1452
    %v1460 = vsub.f32 %v1413, %v1456
    %v1461 = vsub.f32 %v1414, %v1452
    %v1462 = vsub.f32 %v1415, %v1456
    %v1463 = vsub.f32 %v1416, %v1452
    %v1464 = vsub.f32 %v1417, %v1456
    %v1465 = vsub.f32 %v1418, %v1452
    %v1466 = vsub.f32 %v1419, %v1456
    %v1467 = vsub.f32 %v1420, %v1452
    %v1468 = vsub.f32 %v1421, %v1456
    %v1469 = vsub.f32 %v1422, %v1452
    %v1470 = vsub.f32 %v1423, %v1456
    %v1471 = vsub.f32 %v1424, %v1452
    %v1472 = vsub.f32 %v1425, %v1456
    %v1473 = vsub.f32 %v1426, %v1452
    %v1474 = vsub.f32 %v1427, %v1456
    %v1475 = vsub.f32 %v1428, %v1452
    %v1476 = vsub.f32 %v1429, %v1456
    %v1477 = vsub.f32 %v1430, %v1452
    %v1478 = vsub.f32 %v1431, %v1456
    %v1479 = vsub.f32 %v1432, %v1452
    %v1480 = vsub.f32 %v1433, %v1456
    %v1481 = vsub.f32 %v1434, %v1452
    %v1482 = vsub.f32 %v1435, %v1456
    %v1483 = vsub.f32 %v1436, %v1452
    %v1484 = vsub.f32 %v1437, %v1456
    %v1485 = vsub.f32 %v1438, %v1452
    %v1486 = vsub.f32 %v1439, %v1456
    %v1487 = vsub.f32 %v1440, %v1452
    %v1488 = vsub.f32 %v1441, %v1456
    %v1489 = vsub.f32 %v1442, %v1452
    %v1490 = vsub.f32 %v1443, %v1456
    %v1492 = vlaneseq
    %v1493 = vshrl.u32 %v1492, 7
    %v1494 = vsub.s32 0, %v1493
    %v1495 = vrot.slane %v1445, %v1494
    %v1496 = vlaneseq
    %v1497 = vshrl.u32 %v1496, 7
    %v1498 = vsub.s32 1, %v1497
    %v1499 = vrot.slane %v1445, %v1498
    %v1502 = vmul.f32 %v1459, %v1495
    %v1503 = vmul.f32 %v1460, %v1499
    %v1504 = vmul.f32 %v1461, %v1495
    %v1505 = vmul.f32 %v1462, %v1499
    %v1506 = vmul.f32 %v1463, %v1495
    %v1507 = vmul.f32 %v1464, %v1499
    %v1508 = vmul.f32 %v1465, %v1495
    %v1509 = vmul.f32 %v1466, %v1499
    %v1510 = vmul.f32 %v1467, %v1495
    %v1511 = vmul.f32 %v1468, %v1499
    %v1512 = vmul.f32 %v1469, %v1495
    %v1513 = vmul.f32 %v1470, %v1499
    %v1514 = vmul.f32 %v1471, %v1495
    %v1515 = vmul.f32 %v1472, %v1499
    %v1516 = vmul.f32 %v1473, %v1495
    %v1517 = vmul.f32 %v1474, %v1499
    %v1518 = vmul.f32 %v1475, %v1495
    %v1519 = vmul.f32 %v1476, %v1499
    %v1520 = vmul.f32 %v1477, %v1495
    %v1521 = vmul.f32 %v1478, %v1499
    %v1522 = vmul.f32 %v1479, %v1495
    %v1523 = vmul.f32 %v1480, %v1499
    %v1524 = vmul.f32 %v1481, %v1495
    %v1525 = vmul.f32 %v1482, %v1499
    %v1526 = vmul.f32 %v1483, %v1495
    %v1527 = vmul.f32 %v1484, %v1499
    %v1528 = vmul.f32 %v1485, %v1495
    %v1529 = vmul.f32 %v1486, %v1499
    %v1530 = vmul.f32 %v1487, %v1495
    %v1531 = vmul.f32 %v1488, %v1499
    %v1532 = vmul.f32 %v1489, %v1495
    %v1533 = vmul.f32 %v1490, %v1499
    %v1534 = vld [vmem:[#allocation2 + $0x14] sm:$0xf]
    %v1535 = vld [vmem:[#allocation2 + $0x34] sm:$0xf]
    %v1536 = vpack.c.bf16 %v1504, %v1502
    %v1537 = vpack.c.bf16 %v1505, %v1503
    %v1538 = vpack.c.bf16 %v1508, %v1506
    %v1539 = vpack.c.bf16 %v1509, %v1507
    %v1540 = vpack.c.bf16 %v1512, %v1510
    %v1541 = vpack.c.bf16 %v1513, %v1511
    %v1542 = vpack.c.bf16 %v1516, %v1514
    %v1543 = vpack.c.bf16 %v1517, %v1515
    %v1544 = vpack.c.bf16 %v1520, %v1518
    %v1545 = vpack.c.bf16 %v1521, %v1519
    %v1546 = vpack.c.bf16 %v1524, %v1522
    %v1547 = vpack.c.bf16 %v1525, %v1523
    %v1548 = vpack.c.bf16 %v1528, %v1526
    %v1549 = vpack.c.bf16 %v1529, %v1527
    %v1550 = vpack.c.bf16 %v1532, %v1530
    %v1551 = vpack.c.bf16 %v1533, %v1531
    %v1554 = vunpack.c.l.b16 %v1534
    %v1555 = vunpack.c.l.b16 %v1535
    %v1556 = vpack.c.b16 %v1555, %v1554
    %1558 = vmatprep.subr.bf16.mxu0 %v1537
    %1559 = vmatpush1.bf16.msra.mxu0 %v1536
    %1560 = vmatprep.subr.bf16.mxu0 %v1539
    %1561 = vmatpush1.bf16.msra.mxu0 %v1538
    %1562 = vmatprep.subr.bf16.mxu0 %v1541
    %1563 = vmatpush1.bf16.msra.mxu0 %v1540
    %1564 = vmatprep.subr.bf16.mxu0 %v1543
    %1565 = vmatpush1.bf16.msra.mxu0 %v1542
    %1566 = vmatprep.subr.bf16.mxu0 %v1545
    %1567 = vmatpush1.bf16.msra.mxu0 %v1544
    %1568 = vmatprep.subr.bf16.mxu0 %v1547
    %1569 = vmatpush1.bf16.msra.mxu0 %v1546
    %1570 = vmatprep.subr.bf16.mxu0 %v1549
    %1571 = vmatpush1.bf16.msra.mxu0 %v1548
    %1572 = vmatprep.subr.bf16.mxu0 %v1551
    %1573 = vmatpush1.bf16.msra.mxu0 %v1550
    %1574 = vmatprep.subr.bf16.mxu0 0
    %1575 = vmatpush1.bf16.msra.mxu0 0
    %1576 = vmatprep.subr.bf16.mxu0 0
    %1577 = vmatpush1.bf16.msra.mxu0 0
    %1578 = vmatprep.subr.bf16.mxu0 0
    %1579 = vmatpush1.bf16.msra.mxu0 0
    %1580 = vmatprep.subr.bf16.mxu0 0
    %1581 = vmatpush1.bf16.msra.mxu0 0
    %1582 = vmatprep.subr.bf16.mxu0 0
    %1583 = vmatpush1.bf16.msra.mxu0 0
    %1584 = vmatprep.subr.bf16.mxu0 0
    %1585 = vmatpush1.bf16.msra.mxu0 0
    %1586 = vmatprep.subr.bf16.mxu0 0
    %1587 = vmatpush1.bf16.msra.mxu0 0
    %1588 = vmatprep.subr.bf16.mxu0 0
    %1589 = vmatpush1.bf16.msra.mxu0 0
    %1590 = vmatprep.mubr.bf16.mxu0 0
    %1591 = vmatmul.mubr.bf16.gmra.mrb[0].mxu0 %v1556
    %v1592 = vpop.f32.mrb[0].mxu0
    %v1593 = vadd.f32 0.0, %v1592
    %v1594 = vpop.f32.mrb[0].mxu0
    %v1595 = vadd.f32 0.0, %v1594
    %v1596 = vpop.f32.mrb[0].mxu0
    %v1597 = vadd.f32 0.0, %v1596
    %v1598 = vpop.f32.mrb[0].mxu0
    %v1599 = vadd.f32 0.0, %v1598
    %1600 = vdwg.mxu0
    %v1601 = vadd.f32 %v1344, %v1593
    %v1602 = vadd.f32 %v1345, %v1595
    %v1603 = vadd.f32 %v1346, %v1597
    %v1604 = vadd.f32 %v1347, %v1599
    %v1605 = vshra.s32 %v73, 24
    %v1606 = vshra.s32 %v74, 24
    %v1607 = vshra.s32 %v75, 24
    %v1608 = vshra.s32 %v76, 24
    %v1609 = vshra.s32 %v77, 24
    %v1610 = vshra.s32 %v78, 24
    %v1611 = vshra.s32 %v79, 24
    %v1612 = vshra.s32 %v80, 24
    %v1613 = vshra.s32 %v81, 24
    %v1614 = vshra.s32 %v82, 24
    %v1615 = vshra.s32 %v83, 24
    %v1616 = vshra.s32 %v84, 24
    %v1617 = vshra.s32 %v85, 24
    %v1618 = vshra.s32 %v86, 24
    %v1619 = vshra.s32 %v87, 24
    %v1620 = vshra.s32 %v88, 24
    %v1621 = vshra.s32 %v89, 24
    %v1622 = vshra.s32 %v90, 24
    %v1623 = vshra.s32 %v91, 24
    %v1624 = vshra.s32 %v92, 24
    %v1625 = vshra.s32 %v93, 24
    %v1626 = vshra.s32 %v94, 24
    %v1627 = vshra.s32 %v95, 24
    %v1628 = vshra.s32 %v96, 24
    %v1629 = vshra.s32 %v97, 24
    %v1630 = vshra.s32 %v98, 24
    %v1631 = vshra.s32 %v99, 24
    %v1632 = vshra.s32 %v100, 24
    %v1633 = vshra.s32 %v101, 24
    %v1634 = vshra.s32 %v102, 24
    %v1635 = vshra.s32 %v103, 24
    %v1636 = vshra.s32 %v104, 24
    %v1637 = vand.u32 %v1605, 15
    %v1638 = vand.u32 %v1606, 15
    %v1639 = vand.u32 %v1607, 15
    %v1640 = vand.u32 %v1608, 15
    %v1641 = vand.u32 %v1609, 15
    %v1642 = vand.u32 %v1610, 15
    %v1643 = vand.u32 %v1611, 15
    %v1644 = vand.u32 %v1612, 15
    %v1645 = vand.u32 %v1613, 15
    %v1646 = vand.u32 %v1614, 15
    %v1647 = vand.u32 %v1615, 15
    %v1648 = vand.u32 %v1616, 15
    %v1649 = vand.u32 %v1617, 15
    %v1650 = vand.u32 %v1618, 15
    %v1651 = vand.u32 %v1619, 15
    %v1652 = vand.u32 %v1620, 15
    %v1653 = vand.u32 %v1621, 15
    %v1654 = vand.u32 %v1622, 15
    %v1655 = vand.u32 %v1623, 15
    %v1656 = vand.u32 %v1624, 15
    %v1657 = vand.u32 %v1625, 15
    %v1658 = vand.u32 %v1626, 15
    %v1659 = vand.u32 %v1627, 15
    %v1660 = vand.u32 %v1628, 15
    %v1661 = vand.u32 %v1629, 15
    %v1662 = vand.u32 %v1630, 15
    %v1663 = vand.u32 %v1631, 15
    %v1664 = vand.u32 %v1632, 15
    %v1665 = vand.u32 %v1633, 15
    %v1666 = vand.u32 %v1634, 15
    %v1667 = vand.u32 %v1635, 15
    %v1668 = vand.u32 %v1636, 15
    %v1669 = vcvt.s32.f32 %v1637
    %v1670 = vcvt.s32.f32 %v1638
    %v1671 = vcvt.s32.f32 %v1639
    %v1672 = vcvt.s32.f32 %v1640
    %v1673 = vcvt.s32.f32 %v1641
    %v1674 = vcvt.s32.f32 %v1642
    %v1675 = vcvt.s32.f32 %v1643
    %v1676 = vcvt.s32.f32 %v1644
    %v1677 = vcvt.s32.f32 %v1645
    %v1678 = vcvt.s32.f32 %v1646
    %v1679 = vcvt.s32.f32 %v1647
    %v1680 = vcvt.s32.f32 %v1648
    %v1681 = vcvt.s32.f32 %v1649
    %v1682 = vcvt.s32.f32 %v1650
    %v1683 = vcvt.s32.f32 %v1651
    %v1684 = vcvt.s32.f32 %v1652
    %v1685 = vcvt.s32.f32 %v1653
    %v1686 = vcvt.s32.f32 %v1654
    %v1687 = vcvt.s32.f32 %v1655
    %v1688 = vcvt.s32.f32 %v1656
    %v1689 = vcvt.s32.f32 %v1657
    %v1690 = vcvt.s32.f32 %v1658
    %v1691 = vcvt.s32.f32 %v1659
    %v1692 = vcvt.s32.f32 %v1660
    %v1693 = vcvt.s32.f32 %v1661
    %v1694 = vcvt.s32.f32 %v1662
    %v1695 = vcvt.s32.f32 %v1663
    %v1696 = vcvt.s32.f32 %v1664
    %v1697 = vcvt.s32.f32 %v1665
    %v1698 = vcvt.s32.f32 %v1666
    %v1699 = vcvt.s32.f32 %v1667
    %v1700 = vcvt.s32.f32 %v1668
    %s1701 = scalar_lea.vmem [#allocation7], 6
    %v1702 = vld [vmem:[%s1701] ss:$8 sm:$0x3]
    %s1703 = scalar_lea.vmem [#allocation8], 6
    %v1704 = vld [vmem:[%s1703] ss:$8 sm:$0x3]
    %v1706 = vlaneseq
    %v1707 = vshrl.u32 %v1706, 7
    %v1708 = vsub.s32 0, %v1707
    %v1709 = vrot.slane %v1704, %v1708
    %v1710 = vlaneseq
    %v1711 = vshrl.u32 %v1710, 7
    %v1712 = vsub.s32 1, %v1711
    %v1713 = vrot.slane %v1704, %v1712
    %v1716 = vsub.f32 %v1669, %v1709
    %v1717 = vsub.f32 %v1670, %v1713
    %v1718 = vsub.f32 %v1671, %v1709
    %v1719 = vsub.f32 %v1672, %v1713
    %v1720 = vsub.f32 %v1673, %v1709
    %v1721 = vsub.f32 %v1674, %v1713
    %v1722 = vsub.f32 %v1675, %v1709
    %v1723 = vsub.f32 %v1676, %v1713
    %v1724 = vsub.f32 %v1677, %v1709
    %v1725 = vsub.f32 %v1678, %v1713
    %v1726 = vsub.f32 %v1679, %v1709
    %v1727 = vsub.f32 %v1680, %v1713
    %v1728 = vsub.f32 %v1681, %v1709
    %v1729 = vsub.f32 %v1682, %v1713
    %v1730 = vsub.f32 %v1683, %v1709
    %v1731 = vsub.f32 %v1684, %v1713
    %v1732 = vsub.f32 %v1685, %v1709
    %v1733 = vsub.f32 %v1686, %v1713
    %v1734 = vsub.f32 %v1687, %v1709
    %v1735 = vsub.f32 %v1688, %v1713
    %v1736 = vsub.f32 %v1689, %v1709
    %v1737 = vsub.f32 %v1690, %v1713
    %v1738 = vsub.f32 %v1691, %v1709
    %v1739 = vsub.f32 %v1692, %v1713
    %v1740 = vsub.f32 %v1693, %v1709
    %v1741 = vsub.f32 %v1694, %v1713
    %v1742 = vsub.f32 %v1695, %v1709
    %v1743 = vsub.f32 %v1696, %v1713
    %v1744 = vsub.f32 %v1697, %v1709
    %v1745 = vsub.f32 %v1698, %v1713
    %v1746 = vsub.f32 %v1699, %v1709
    %v1747 = vsub.f32 %v1700, %v1713
    %v1749 = vlaneseq
    %v1750 = vshrl.u32 %v1749, 7
    %v1751 = vsub.s32 0, %v1750
    %v1752 = vrot.slane %v1702, %v1751
    %v1753 = vlaneseq
    %v1754 = vshrl.u32 %v1753, 7
    %v1755 = vsub.s32 1, %v1754
    %v1756 = vrot.slane %v1702, %v1755
    %v1759 = vmul.f32 %v1716, %v1752
    %v1760 = vmul.f32 %v1717, %v1756
    %v1761 = vmul.f32 %v1718, %v1752
    %v1762 = vmul.f32 %v1719, %v1756
    %v1763 = vmul.f32 %v1720, %v1752
    %v1764 = vmul.f32 %v1721, %v1756
    %v1765 = vmul.f32 %v1722, %v1752
    %v1766 = vmul.f32 %v1723, %v1756
    %v1767 = vmul.f32 %v1724, %v1752
    %v1768 = vmul.f32 %v1725, %v1756
    %v1769 = vmul.f32 %v1726, %v1752
    %v1770 = vmul.f32 %v1727, %v1756
    %v1771 = vmul.f32 %v1728, %v1752
    %v1772 = vmul.f32 %v1729, %v1756
    %v1773 = vmul.f32 %v1730, %v1752
    %v1774 = vmul.f32 %v1731, %v1756
    %v1775 = vmul.f32 %v1732, %v1752
    %v1776 = vmul.f32 %v1733, %v1756
    %v1777 = vmul.f32 %v1734, %v1752
    %v1778 = vmul.f32 %v1735, %v1756
    %v1779 = vmul.f32 %v1736, %v1752
    %v1780 = vmul.f32 %v1737, %v1756
    %v1781 = vmul.f32 %v1738, %v1752
    %v1782 = vmul.f32 %v1739, %v1756
    %v1783 = vmul.f32 %v1740, %v1752
    %v1784 = vmul.f32 %v1741, %v1756
    %v1785 = vmul.f32 %v1742, %v1752
    %v1786 = vmul.f32 %v1743, %v1756
    %v1787 = vmul.f32 %v1744, %v1752
    %v1788 = vmul.f32 %v1745, %v1756
    %v1789 = vmul.f32 %v1746, %v1752
    %v1790 = vmul.f32 %v1747, %v1756
    %v1791 = vld [vmem:[#allocation2 + $0x18] sm:$0xf]
    %v1792 = vld [vmem:[#allocation2 + $0x38] sm:$0xf]
    %v1793 = vpack.c.bf16 %v1761, %v1759
    %v1794 = vpack.c.bf16 %v1762, %v1760
    %v1795 = vpack.c.bf16 %v1765, %v1763
    %v1796 = vpack.c.bf16 %v1766, %v1764
    %v1797 = vpack.c.bf16 %v1769, %v1767
    %v1798 = vpack.c.bf16 %v1770, %v1768
    %v1799 = vpack.c.bf16 %v1773, %v1771
    %v1800 = vpack.c.bf16 %v1774, %v1772
    %v1801 = vpack.c.bf16 %v1777, %v1775
    %v1802 = vpack.c.bf16 %v1778, %v1776
    %v1803 = vpack.c.bf16 %v1781, %v1779
    %v1804 = vpack.c.bf16 %v1782, %v1780
    %v1805 = vpack.c.bf16 %v1785, %v1783
    %v1806 = vpack.c.bf16 %v1786, %v1784
    %v1807 = vpack.c.bf16 %v1789, %v1787
    %v1808 = vpack.c.bf16 %v1790, %v1788
    %v1811 = vunpack.c.l.b16 %v1791
    %v1812 = vunpack.c.l.b16 %v1792
    %v1813 = vpack.c.b16 %v1812, %v1811
    %1815 = vmatprep.subr.bf16.mxu0 %v1794
    %1816 = vmatpush1.bf16.msra.mxu0 %v1793
    %1817 = vmatprep.subr.bf16.mxu0 %v1796
    %1818 = vmatpush1.bf16.msra.mxu0 %v1795
    %1819 = vmatprep.subr.bf16.mxu0 %v1798
    %1820 = vmatpush1.bf16.msra.mxu0 %v1797
    %1821 = vmatprep.subr.bf16.mxu0 %v1800
    %1822 = vmatpush1.bf16.msra.mxu0 %v1799
    %1823 = vmatprep.subr.bf16.mxu0 %v1802
    %1824 = vmatpush1.bf16.msra.mxu0 %v1801
    %1825 = vmatprep.subr.bf16.mxu0 %v1804
    %1826 = vmatpush1.bf16.msra.mxu0 %v1803
    %1827 = vmatprep.subr.bf16.mxu0 %v1806
    %1828 = vmatpush1.bf16.msra.mxu0 %v1805
    %1829 = vmatprep.subr.bf16.mxu0 %v1808
    %1830 = vmatpush1.bf16.msra.mxu0 %v1807
    %1831 = vmatprep.subr.bf16.mxu0 0
    %1832 = vmatpush1.bf16.msra.mxu0 0
    %1833 = vmatprep.subr.bf16.mxu0 0
    %1834 = vmatpush1.bf16.msra.mxu0 0
    %1835 = vmatprep.subr.bf16.mxu0 0
    %1836 = vmatpush1.bf16.msra.mxu0 0
    %1837 = vmatprep.subr.bf16.mxu0 0
    %1838 = vmatpush1.bf16.msra.mxu0 0
    %1839 = vmatprep.subr.bf16.mxu0 0
    %1840 = vmatpush1.bf16.msra.mxu0 0
    %1841 = vmatprep.subr.bf16.mxu0 0
    %1842 = vmatpush1.bf16.msra.mxu0 0
    %1843 = vmatprep.subr.bf16.mxu0 0
    %1844 = vmatpush1.bf16.msra.mxu0 0
    %1845 = vmatprep.subr.bf16.mxu0 0
    %1846 = vmatpush1.bf16.msra.mxu0 0
    %1847 = vmatprep.mubr.bf16.mxu0 0
    %1848 = vmatmul.mubr.bf16.gmra.mrb[0].mxu0 %v1813
    %v1849 = vpop.f32.mrb[0].mxu0
    %v1850 = vadd.f32 0.0, %v1849
    %v1851 = vpop.f32.mrb[0].mxu0
    %v1852 = vadd.f32 0.0, %v1851
    %v1853 = vpop.f32.mrb[0].mxu0
    %v1854 = vadd.f32 0.0, %v1853
    %v1855 = vpop.f32.mrb[0].mxu0
    %v1856 = vadd.f32 0.0, %v1855
    %1857 = vdwg.mxu0
    %v1858 = vadd.f32 %v1601, %v1850
    %v1859 = vadd.f32 %v1602, %v1852
    %v1860 = vadd.f32 %v1603, %v1854
    %v1861 = vadd.f32 %v1604, %v1856
    %v1862 = vshra.s32 %v73, 28
    %v1863 = vshra.s32 %v74, 28
    %v1864 = vshra.s32 %v75, 28
    %v1865 = vshra.s32 %v76, 28
    %v1866 = vshra.s32 %v77, 28
    %v1867 = vshra.s32 %v78, 28
    %v1868 = vshra.s32 %v79, 28
    %v1869 = vshra.s32 %v80, 28
    %v1870 = vshra.s32 %v81, 28
    %v1871 = vshra.s32 %v82, 28
    %v1872 = vshra.s32 %v83, 28
    %v1873 = vshra.s32 %v84, 28
    %v1874 = vshra.s32 %v85, 28
    %v1875 = vshra.s32 %v86, 28
    %v1876 = vshra.s32 %v87, 28
    %v1877 = vshra.s32 %v88, 28
    %v1878 = vshra.s32 %v89, 28
    %v1879 = vshra.s32 %v90, 28
    %v1880 = vshra.s32 %v91, 28
    %v1881 = vshra.s32 %v92, 28
    %v1882 = vshra.s32 %v93, 28
    %v1883 = vshra.s32 %v94, 28
    %v1884 = vshra.s32 %v95, 28
    %v1885 = vshra.s32 %v96, 28
    %v1886 = vshra.s32 %v97, 28
    %v1887 = vshra.s32 %v98, 28
    %v1888 = vshra.s32 %v99, 28
    %v1889 = vshra.s32 %v100, 28
    %v1890 = vshra.s32 %v101, 28
    %v1891 = vshra.s32 %v102, 28
    %v1892 = vshra.s32 %v103, 28
    %v1893 = vshra.s32 %v104, 28
    %v1894 = vand.u32 %v1862, 15
    %v1895 = vand.u32 %v1863, 15
    %v1896 = vand.u32 %v1864, 15
    %v1897 = vand.u32 %v1865, 15
    %v1898 = vand.u32 %v1866, 15
    %v1899 = vand.u32 %v1867, 15
    %v1900 = vand.u32 %v1868, 15
    %v1901 = vand.u32 %v1869, 15
    %v1902 = vand.u32 %v1870, 15
    %v1903 = vand.u32 %v1871, 15
    %v1904 = vand.u32 %v1872, 15
    %v1905 = vand.u32 %v1873, 15
    %v1906 = vand.u32 %v1874, 15
    %v1907 = vand.u32 %v1875, 15
    %v1908 = vand.u32 %v1876, 15
    %v1909 = vand.u32 %v1877, 15
    %v1910 = vand.u32 %v1878, 15
    %v1911 = vand.u32 %v1879, 15
    %v1912 = vand.u32 %v1880, 15
    %v1913 = vand.u32 %v1881, 15
    %v1914 = vand.u32 %v1882, 15
    %v1915 = vand.u32 %v1883, 15
    %v1916 = vand.u32 %v1884, 15
    %v1917 = vand.u32 %v1885, 15
    %v1918 = vand.u32 %v1886, 15
    %v1919 = vand.u32 %v1887, 15
    %v1920 = vand.u32 %v1888, 15
    %v1921 = vand.u32 %v1889, 15
    %v1922 = vand.u32 %v1890, 15
    %v1923 = vand.u32 %v1891, 15
    %v1924 = vand.u32 %v1892, 15
    %v1925 = vand.u32 %v1893, 15
    %v1926 = vcvt.s32.f32 %v1894
    %v1927 = vcvt.s32.f32 %v1895
    %v1928 = vcvt.s32.f32 %v1896
    %v1929 = vcvt.s32.f32 %v1897
    %v1930 = vcvt.s32.f32 %v1898
    %v1931 = vcvt.s32.f32 %v1899
    %v1932 = vcvt.s32.f32 %v1900
    %v1933 = vcvt.s32.f32 %v1901
    %v1934 = vcvt.s32.f32 %v1902
    %v1935 = vcvt.s32.f32 %v1903
    %v1936 = vcvt.s32.f32 %v1904
    %v1937 = vcvt.s32.f32 %v1905
    %v1938 = vcvt.s32.f32 %v1906
    %v1939 = vcvt.s32.f32 %v1907
    %v1940 = vcvt.s32.f32 %v1908
    %v1941 = vcvt.s32.f32 %v1909
    %v1942 = vcvt.s32.f32 %v1910
    %v1943 = vcvt.s32.f32 %v1911
    %v1944 = vcvt.s32.f32 %v1912
    %v1945 = vcvt.s32.f32 %v1913
    %v1946 = vcvt.s32.f32 %v1914
    %v1947 = vcvt.s32.f32 %v1915
    %v1948 = vcvt.s32.f32 %v1916
    %v1949 = vcvt.s32.f32 %v1917
    %v1950 = vcvt.s32.f32 %v1918
    %v1951 = vcvt.s32.f32 %v1919
    %v1952 = vcvt.s32.f32 %v1920
    %v1953 = vcvt.s32.f32 %v1921
    %v1954 = vcvt.s32.f32 %v1922
    %v1955 = vcvt.s32.f32 %v1923
    %v1956 = vcvt.s32.f32 %v1924
    %v1957 = vcvt.s32.f32 %v1925
    %s1958 = scalar_lea.vmem [#allocation7], 7
    %v1959 = vld [vmem:[%s1958] ss:$8 sm:$0x3]
    %s1960 = scalar_lea.vmem [#allocation8], 7
    %v1961 = vld [vmem:[%s1960] ss:$8 sm:$0x3]
    %v1963 = vlaneseq
    %v1964 = vshrl.u32 %v1963, 7
    %v1965 = vsub.s32 0, %v1964
    %v1966 = vrot.slane %v1961, %v1965
    %v1967 = vlaneseq
    %v1968 = vshrl.u32 %v1967, 7
    %v1969 = vsub.s32 1, %v1968
    %v1970 = vrot.slane %v1961, %v1969
    %v1973 = vsub.f32 %v1926, %v1966
    %v1974 = vsub.f32 %v1927, %v1970
    %v1975 = vsub.f32 %v1928, %v1966
    %v1976 = vsub.f32 %v1929, %v1970
    %v1977 = vsub.f32 %v1930, %v1966
    %v1978 = vsub.f32 %v1931, %v1970
    %v1979 = vsub.f32 %v1932, %v1966
    %v1980 = vsub.f32 %v1933, %v1970
    %v1981 = vsub.f32 %v1934, %v1966
    %v1982 = vsub.f32 %v1935, %v1970
    %v1983 = vsub.f32 %v1936, %v1966
    %v1984 = vsub.f32 %v1937, %v1970
    %v1985 = vsub.f32 %v1938, %v1966
    %v1986 = vsub.f32 %v1939, %v1970
    %v1987 = vsub.f32 %v1940, %v1966
    %v1988 = vsub.f32 %v1941, %v1970
    %v1989 = vsub.f32 %v1942, %v1966
    %v1990 = vsub.f32 %v1943, %v1970
    %v1991 = vsub.f32 %v1944, %v1966
    %v1992 = vsub.f32 %v1945, %v1970
    %v1993 = vsub.f32 %v1946, %v1966
    %v1994 = vsub.f32 %v1947, %v1970
    %v1995 = vsub.f32 %v1948, %v1966
    %v1996 = vsub.f32 %v1949, %v1970
    %v1997 = vsub.f32 %v1950, %v1966
    %v1998 = vsub.f32 %v1951, %v1970
    %v1999 = vsub.f32 %v1952, %v1966
    %v2000 = vsub.f32 %v1953, %v1970
    %v2001 = vsub.f32 %v1954, %v1966
    %v2002 = vsub.f32 %v1955, %v1970
    %v2003 = vsub.f32 %v1956, %v1966
    %v2004 = vsub.f32 %v1957, %v1970
    %v2006 = vlaneseq
    %v2007 = vshrl.u32 %v2006, 7
    %v2008 = vsub.s32 0, %v2007
    %v2009 = vrot.slane %v1959, %v2008
    %v2010 = vlaneseq
    %v2011 = vshrl.u32 %v2010, 7
    %v2012 = vsub.s32 1, %v2011
    %v2013 = vrot.slane %v1959, %v2012
    %v2016 = vmul.f32 %v1973, %v2009
    %v2017 = vmul.f32 %v1974, %v2013
    %v2018 = vmul.f32 %v1975, %v2009
    %v2019 = vmul.f32 %v1976, %v2013
    %v2020 = vmul.f32 %v1977, %v2009
    %v2021 = vmul.f32 %v1978, %v2013
    %v2022 = vmul.f32 %v1979, %v2009
    %v2023 = vmul.f32 %v1980, %v2013
    %v2024 = vmul.f32 %v1981, %v2009
    %v2025 = vmul.f32 %v1982, %v2013
    %v2026 = vmul.f32 %v1983, %v2009
    %v2027 = vmul.f32 %v1984, %v2013
    %v2028 = vmul.f32 %v1985, %v2009
    %v2029 = vmul.f32 %v1986, %v2013
    %v2030 = vmul.f32 %v1987, %v2009
    %v2031 = vmul.f32 %v1988, %v2013
    %v2032 = vmul.f32 %v1989, %v2009
    %v2033 = vmul.f32 %v1990, %v2013
    %v2034 = vmul.f32 %v1991, %v2009
    %v2035 = vmul.f32 %v1992, %v2013
    %v2036 = vmul.f32 %v1993, %v2009
    %v2037 = vmul.f32 %v1994, %v2013
    %v2038 = vmul.f32 %v1995, %v2009
    %v2039 = vmul.f32 %v1996, %v2013
    %v2040 = vmul.f32 %v1997, %v2009
    %v2041 = vmul.f32 %v1998, %v2013
    %v2042 = vmul.f32 %v1999, %v2009
    %v2043 = vmul.f32 %v2000, %v2013
    %v2044 = vmul.f32 %v2001, %v2009
    %v2045 = vmul.f32 %v2002, %v2013
    %v2046 = vmul.f32 %v2003, %v2009
    %v2047 = vmul.f32 %v2004, %v2013
    %v2048 = vld [vmem:[#allocation2 + $0x1c] sm:$0xf]
    %v2049 = vld [vmem:[#allocation2 + $0x3c] sm:$0xf]
    %v2050 = vpack.c.bf16 %v2018, %v2016
    %v2051 = vpack.c.bf16 %v2019, %v2017
    %v2052 = vpack.c.bf16 %v2022, %v2020
    %v2053 = vpack.c.bf16 %v2023, %v2021
    %v2054 = vpack.c.bf16 %v2026, %v2024
    %v2055 = vpack.c.bf16 %v2027, %v2025
    %v2056 = vpack.c.bf16 %v2030, %v2028
    %v2057 = vpack.c.bf16 %v2031, %v2029
    %v2058 = vpack.c.bf16 %v2034, %v2032
    %v2059 = vpack.c.bf16 %v2035, %v2033
    %v2060 = vpack.c.bf16 %v2038, %v2036
    %v2061 = vpack.c.bf16 %v2039, %v2037
    %v2062 = vpack.c.bf16 %v2042, %v2040
    %v2063 = vpack.c.bf16 %v2043, %v2041
    %v2064 = vpack.c.bf16 %v2046, %v2044
    %v2065 = vpack.c.bf16 %v2047, %v2045
    %v2068 = vunpack.c.l.b16 %v2048
    %v2069 = vunpack.c.l.b16 %v2049
    %v2070 = vpack.c.b16 %v2069, %v2068
    %2072 = vmatprep.subr.bf16.mxu0 %v2051
    %2073 = vmatpush1.bf16.msra.mxu0 %v2050
    %2074 = vmatprep.subr.bf16.mxu0 %v2053
    %2075 = vmatpush1.bf16.msra.mxu0 %v2052
    %2076 = vmatprep.subr.bf16.mxu0 %v2055
    %2077 = vmatpush1.bf16.msra.mxu0 %v2054
    %2078 = vmatprep.subr.bf16.mxu0 %v2057
    %2079 = vmatpush1.bf16.msra.mxu0 %v2056
    %2080 = vmatprep.subr.bf16.mxu0 %v2059
    %2081 = vmatpush1.bf16.msra.mxu0 %v2058
    %2082 = vmatprep.subr.bf16.mxu0 %v2061
    %2083 = vmatpush1.bf16.msra.mxu0 %v2060
    %2084 = vmatprep.subr.bf16.mxu0 %v2063
    %2085 = vmatpush1.bf16.msra.mxu0 %v2062
    %2086 = vmatprep.subr.bf16.mxu0 %v2065
    %2087 = vmatpush1.bf16.msra.mxu0 %v2064
    %2088 = vmatprep.subr.bf16.mxu0 0
    %2089 = vmatpush1.bf16.msra.mxu0 0
    %2090 = vmatprep.subr.bf16.mxu0 0
    %2091 = vmatpush1.bf16.msra.mxu0 0
    %2092 = vmatprep.subr.bf16.mxu0 0
    %2093 = vmatpush1.bf16.msra.mxu0 0
    %2094 = vmatprep.subr.bf16.mxu0 0
    %2095 = vmatpush1.bf16.msra.mxu0 0
    %2096 = vmatprep.subr.bf16.mxu0 0
    %2097 = vmatpush1.bf16.msra.mxu0 0
    %2098 = vmatprep.subr.bf16.mxu0 0
    %2099 = vmatpush1.bf16.msra.mxu0 0
    %2100 = vmatprep.subr.bf16.mxu0 0
    %2101 = vmatpush1.bf16.msra.mxu0 0
    %2102 = vmatprep.subr.bf16.mxu0 0
    %2103 = vmatpush1.bf16.msra.mxu0 0
    %2104 = vmatprep.mubr.bf16.mxu0 0
    %2105 = vmatmul.mubr.bf16.gmra.mrb[0].mxu0 %v2070
    %v2106 = vpop.f32.mrb[0].mxu0
    %v2107 = vadd.f32 0.0, %v2106
    %v2108 = vpop.f32.mrb[0].mxu0
    %v2109 = vadd.f32 0.0, %v2108
    %v2110 = vpop.f32.mrb[0].mxu0
    %v2111 = vadd.f32 0.0, %v2110
    %v2112 = vpop.f32.mrb[0].mxu0
    %v2113 = vadd.f32 0.0, %v2112
    %2114 = vdwg.mxu0
    %v2115 = vadd.f32 %v1858, %v2107
    %v2116 = vadd.f32 %v1859, %v2109
    %v2117 = vadd.f32 %v1860, %v2111
    %v2118 = vadd.f32 %v1861, %v2113
    %v2119 = vld [vmem:[%s4] sm:$0x3]
    %v2121 = vlaneseq
    %v2122 = vshrl.u32 %v2121, 7
    %v2123 = vsub.s32 0, %v2122
    %v2124 = vrot.slane %v2119, %v2123
    %v2125 = vlaneseq
    %v2126 = vshrl.u32 %v2125, 7
    %v2127 = vsub.s32 1, %v2126
    %v2128 = vrot.slane %v2119, %v2127
    %v2131 = vadd.f32 %v2115, %v2124
    %v2132 = vadd.f32 %v2116, %v2128
    %v2133 = vadd.f32 %v2117, %v2124
    %v2134 = vadd.f32 %v2118, %v2128
    %2135 = vst [vmem:[#allocation10] sm:$0xff] %v2131
    %2136 = vst [vmem:[#allocation10 + $0x8] sm:$0xff] %v2132
    %2137 = vst [vmem:[#allocation10 + $0x10] sm:$0xff] %v2133
    %2138 = vst [vmem:[#allocation10 + $0x18] sm:$0xff] %v2134
    // Predicated region
    $region38: #{tpu_custom_call.1} parent=1 // pred_check
      _
    $region39: #{tpu_custom_call.1} parent=1 // pred_check_branch
      %2140 = sbr.rel (0) target = $region41
    $region40: #{tpu_custom_call.1} parent=1 // pred_region
      %s2142 = ssub.s32 512, 512
      %2143 = vsyncadd [#allocation4], %s2142
      %s2144 = sshll.u32 [#allocation10], 4
      %s2145 = int_to_ptr.vmem [resolvable:$true] %s2144
      %2150 = dma.vmem_to_hbm [thread:$0]  %s2145, 512, %s5, [#allocation4], 256, 256, 16
    $region41: #{tpu_custom_call.1} parent=1 // pred_fallthru
      _
    // Predicated region
    $region42: #{tpu_custom_call.1} parent=1 // pred_check
      _
    $region43: #{tpu_custom_call.1} parent=1 // pred_check_branch
      %2152 = sbr.rel (0) target = $region45
    $region44: #{tpu_custom_call.1} parent=1 // pred_region
      %2153 = dma.done [#allocation4], 512
    $region45: #{tpu_custom_call.1} parent=1 // pred_fallthru
      _
    %2154 = vsyncpa [#allocation3], 1
    %2155 = vsyncpa [#allocation6], 1
    %2156 = vsyncpa [#allocation9], 1
    %2157 = vsyncpa [#allocation4], 1

</llo_original>
